<compile_context>
chip_gen: v5e
topology: v5e:2x2
jax: 0.10.0
libtpu: 0.0.40
codegen_flags: <defaults>
</compile_context>

<pallas_src>
import functools

import jax
import jax.numpy as jnp
from jax.experimental import pallas as pl
from jax.experimental.pallas import tpu as pltpu

# Large finite negative: exp() underflows to exactly 0 in fp32, matching the
# masked_fill(-inf) + softmax semantics without -inf arithmetic hazards.
_MASK_NEG = -1.0e30


def _mha_kernel(x_ref, wq_ref, wk_ref, wv_ref, bq_ref, bk_ref, bv_ref, wo_ref,
                o_ref, k_scratch, v_scratch, attn_scratch,
                *, n_head, head_size, q_tile, scale, compute_dtype):
    qi = pl.program_id(1)

    # ---- K/V projection: once per batch element, cached in VMEM scratch that
    #      persists across the (arbitrary) query-tile axis. --------------------
    @pl.when(qi == 0)
    def _project_kv():
        xs = x_ref[0].astype(compute_dtype)                                # (T, C)
        k = jnp.dot(xs, wk_ref[...], preferred_element_type=jnp.float32) + bk_ref[...]
        v = jnp.dot(xs, wv_ref[...], preferred_element_type=jnp.float32) + bv_ref[...]
        nb, kv_blk, hh = k_scratch.shape
        k_scratch[...] = k.astype(compute_dtype).reshape(nb, kv_blk, hh)
        v_scratch[...] = v.astype(compute_dtype).reshape(nb, kv_blk, hh)

    # ---- Q projection for this query tile, sliced from the resident x block. -
    q_start = pl.multiple_of(qi * q_tile, q_tile)
    xq = x_ref[0, pl.ds(q_start, q_tile), :].astype(compute_dtype)         # (TQ, C)
    q = jnp.dot(xq, wq_ref[...], preferred_element_type=jnp.float32) + bq_ref[...]
    q = (q * scale).astype(compute_dtype)        # fold 1/sqrt(C) into q once
    q_heads = [q[:, h * head_size:(h + 1) * head_size] for h in range(n_head)]

    # Additive causal mask for the DIAGONAL KV block only (same for every tile);
    # blocks above the diagonal are skipped by the loop bound, below are unmasked.
    li = jax.lax.broadcasted_iota(jnp.int32, (q_tile, q_tile), 0)
    lj = jax.lax.broadcasted_iota(jnp.int32, (q_tile, q_tile), 1)
    diag_mask = jnp.where(li >= lj, 0.0, _MASK_NEG).astype(jnp.float32)

    dn = (((1,), (1,)), ((), ()))    # contract last dims of q and k (no k.T needed)
    num_kv = qi + 1                  # causal block skip

    # ---- Online-softmax loop over causal KV blocks (fp32 softmax state). -----
    def kv_step(j, carry):
        kj = k_scratch[j]            # (kv_blk, H*hs) compute dtype
        vj = v_scratch[j]
        is_diag = j == qi
        new_carry = []
        for h in range(n_head):      # n_head small & static -> unrolled
            lo = h * head_size
            hi = lo + head_size
            m_prev, l_prev, acc_prev = carry[h]
            s = jax.lax.dot_general(q_heads[h], kj[:, lo:hi], dn,
                                    preferred_element_type=jnp.float32)    # (TQ, kv_blk)
            s = jnp.where(is_diag, s + diag_mask, s)
            m_new = jnp.maximum(m_prev, jnp.max(s, axis=-1, keepdims=True))
            alpha = jnp.exp(m_prev - m_new)
            p = jnp.exp(s - m_new)                                         # fp32
            l_new = alpha * l_prev + jnp.sum(p, axis=-1, keepdims=True)
            acc_new = alpha * acc_prev + jnp.dot(
                p.astype(compute_dtype), vj[:, lo:hi],
                preferred_element_type=jnp.float32)
            new_carry.append((m_new, l_new, acc_new))
        return tuple(new_carry)

    init = tuple(
        (jnp.full((q_tile, 1), _MASK_NEG, jnp.float32),
         jnp.zeros((q_tile, 1), jnp.float32),
         jnp.zeros((q_tile, head_size), jnp.float32))
        for _ in range(n_head))
    final = jax.lax.fori_loop(0, num_kv, kv_step, init)

    # TODO(synk): dropout layers are identity in eval mode; training-mode dropout
    # is not implemented.

    # ---- Normalized head outputs -> (TQ, H*hs) scratch slab (no concat). -----
    for h in range(n_head):
        lo = h * head_size
        hi = lo + head_size
        _, l_f, acc_f = final[h]
        inv_l = pl.reciprocal(l_f, approx=True)          # EUP slot, ~free
        attn_scratch[:, lo:hi] = (acc_f * inv_l).astype(compute_dtype)

    # ---- Single dense output projection from the scratch slab. ---------------
    out = jnp.dot(attn_scratch[...], wo_ref[...], preferred_element_type=jnp.float32)
    o_ref[0] = out.astype(o_ref.dtype)


def multi_head_attention(x, wq, wk, wv, bq, bk, bv, wo_t, *,
                         compute_dtype=jnp.bfloat16, q_tile=None):
    """Causal MHA matching the PyTorch module (eval mode).

    x        : (B, T, C)
    wq/wk/wv : (H, C, hs)   per-head weights (pre-transposed vs torch.nn.Linear)
    bq/bk/bv : (H, 1, hs)
    wo_t     : (H*hs, C)    output projection weight, pre-transposed (no bias)
    """
    B, T, C = x.shape
    H, _, hs = wq.shape
    HHS = H * hs
    assert wo_t.shape == (HHS, C)

    if q_tile is None:
        q_tile = next((t for t in (512, 256, 128) if T % t == 0), T)
    assert T % q_tile == 0
    assert q_tile == T or q_tile % 8 == 0
    num_kv_blocks = T // q_tile

    # Fuse per-head weights into lane-dense 2-D operands:
    #   (H, C, hs) -> (C, H*hs),  (H, 1, hs) -> (1, H*hs)
    wq_f = jnp.transpose(wq, (1, 0, 2)).reshape(C, HHS).astype(compute_dtype)
    wk_f = jnp.transpose(wk, (1, 0, 2)).reshape(C, HHS).astype(compute_dtype)
    wv_f = jnp.transpose(wv, (1, 0, 2)).reshape(C, HHS).astype(compute_dtype)
    bq_f = bq.reshape(1, HHS).astype(jnp.float32)
    bk_f = bk.reshape(1, HHS).astype(jnp.float32)
    bv_f = bv.reshape(1, HHS).astype(jnp.float32)
    wo_f = wo_t.astype(compute_dtype)
    x_c = x.astype(compute_dtype)

    kernel = functools.partial(
        _mha_kernel, n_head=H, head_size=hs, q_tile=q_tile,
        scale=float(C) ** -0.5, compute_dtype=compute_dtype)

    # Explicit scoped-VMEM limit sized from the actual buffer sum with headroom.
    cdt = jnp.dtype(compute_dtype).itemsize
    est = (T * C * cdt * 2                         # resident x block (double buffered)
           + 4 * C * HHS * cdt                     # single-buffered weight slabs
           + 3 * HHS * 4                           # fp32 bias rows
           + q_tile * C * x.dtype.itemsize * 2     # output tile (double buffered)
           + (2 * T + q_tile) * HHS * cdt)         # K/V/attn scratch
    vmem_limit = int(min(100 << 20, max(32 << 20, 2 * est + (8 << 20))))

    const2 = lambda b, qi: (0, 0)

    def build(single_buffer_weights):
        if single_buffer_weights:
            # Grid-invariant operands: single-buffer to reclaim dead VMEM.
            inv_spec = lambda shape: pl.BlockSpec(
                shape, const2, pipeline_mode=pl.Buffered(1))
        else:
            inv_spec = lambda shape: pl.BlockSpec(shape, const2)
        return pl.pallas_call(
            kernel,
            out_shape=jax.ShapeDtypeStruct((B, T, C), x.dtype),
            grid_spec=pltpu.PrefetchScalarGridSpec(
                num_scalar_prefetch=0,
                grid=(B, T // q_tile),
                in_specs=[
                    pl.BlockSpec((1, T, C), lambda b, qi: (b, 0, 0)),  # full seq x
                    inv_spec((C, HHS)),                                # Wq fused
                    inv_spec((C, HHS)),                                # Wk fused
                    inv_spec((C, HHS)),                                # Wv fused
                    inv_spec((1, HHS)),                                # bq fused
                    inv_spec((1, HHS)),                                # bk fused
                    inv_spec((1, HHS)),                                # bv fused
                    inv_spec((HHS, C)),                                # W_O^T
                ],
                out_specs=pl.BlockSpec((1, q_tile, C), lambda b, qi: (b, qi, 0)),
                scratch_shapes=[
                    pltpu.VMEM((num_kv_blocks, q_tile, HHS), compute_dtype),  # K cache
                    pltpu.VMEM((num_kv_blocks, q_tile, HHS), compute_dtype),  # V cache
                    pltpu.VMEM((q_tile, HHS), compute_dtype),                 # head outs
                ],
            ),
            compiler_params=pltpu.CompilerParams(
                # K/V scratch carries across query tiles -> that axis is "arbitrary";
                # batch axis stays "parallel" for megacore sharding.
                dimension_semantics=("parallel", "arbitrary"),
                vmem_limit_bytes=vmem_limit),
        )

    args = (x_c, wq_f, wk_f, wv_f, bq_f, bk_f, bv_f, wo_f)
    try:
        return jax.block_until_ready(build(True)(*args))
    except Exception:
        # Fallback for JAX versions without BlockSpec pipeline_mode / pl.Buffered
        # support on TPU; identical kernel, default double-buffered weights.
        return build(False)(*args)


def reference_mha(x, wq, wk, wv, bq, bk, bv, wo_t):
    """Pure-JAX fp32 reference mirroring the PyTorch forward (eval mode)."""
    B, T, C = x.shape
    H, _, hs = wq.shape
    causal = jnp.tril(jnp.ones((T, T))) > 0
    outs = []
    for h in range(H):
        q = x @ wq[h] + bq[h]
        k = x @ wk[h] + bk[h]
        v = x @ wv[h] + bv[h]
        wei = (q @ jnp.swapaxes(k, -1, -2)) * (C ** -0.5)
        wei = jnp.where(causal, wei, -jnp.inf)
        wei = jax.nn.softmax(wei, axis=-1)
        outs.append(wei @ v)
    cat = jnp.concatenate(outs, axis=-1)
    return cat @ wo_t


if __name__ == "__main__":
    B, T = 2, 8
    n_embed, n_head = 32, 4
    head_size = n_embed // n_head  # 8; the PyTorch mask buffer requires T <= head_size

    key = jax.random.PRNGKey(0)
    ks = jax.random.split(key, 8)
    x = jax.random.normal(ks[0], (B, T, n_embed), jnp.float32)
    wq = 0.1 * jax.random.normal(ks[1], (n_head, n_embed, head_size), jnp.float32)
    wk = 0.1 * jax.random.normal(ks[2], (n_head, n_embed, head_size), jnp.float32)
    wv = 0.1 * jax.random.normal(ks[3], (n_head, n_embed, head_size), jnp.float32)
    bq = 0.1 * jax.random.normal(ks[4], (n_head, 1, head_size), jnp.float32)
    bk = 0.1 * jax.random.normal(ks[5], (n_head, 1, head_size), jnp.float32)
    bv = 0.1 * jax.random.normal(ks[6], (n_head, 1, head_size), jnp.float32)
    wo_t = 0.1 * jax.random.normal(ks[7], (n_head * head_size, n_embed), jnp.float32)

    ref = reference_mha(x, wq, wk, wv, bq, bk, bv, wo_t)

    # fp32-operand path: tight numerical check (approx reciprocal only).
    out_f32 = multi_head_attention(x, wq, wk, wv, bq, bk, bv, wo_t,
                                   compute_dtype=jnp.float32)
    out_f32 = jax.block_until_ready(out_f32)
    assert out_f32.shape == (B, T, n_embed), out_f32.shape
    assert jnp.allclose(out_f32, ref, atol=5e-3, rtol=5e-3), "f32 path mismatch vs reference"

    # bf16-operand / fp32-accumulate path (MXU-rate on v5e/v6e/v7x); looser tolerance.
    out_bf16 = multi_head_attention(x, wq, wk, wv, bq, bk, bv, wo_t,
                                    compute_dtype=jnp.bfloat16)
    out_bf16 = jax.block_until_ready(out_bf16)
    assert out_bf16.shape == (B, T, n_embed), out_bf16.shape
    assert jnp.allclose(out_bf16, ref, atol=5e-2, rtol=5e-2), "bf16 path mismatch vs reference"

    print("KERNEL_OK")
</pallas_src>

<mosaic_0001>
module attributes {stable_mosaic.version = 11 : i64} {
  func.func @_mha_kernel(%arg0: i32, %arg1: i32, %arg2: memref<1x8x32xf32, #tpu.memory_space<vmem>>, %arg3: memref<32x32xf32, #tpu.memory_space<vmem>>, %arg4: memref<32x32xf32, #tpu.memory_space<vmem>>, %arg5: memref<32x32xf32, #tpu.memory_space<vmem>>, %arg6: memref<1x32xf32, #tpu.memory_space<vmem>>, %arg7: memref<1x32xf32, #tpu.memory_space<vmem>>, %arg8: memref<1x32xf32, #tpu.memory_space<vmem>>, %arg9: memref<32x32xf32, #tpu.memory_space<vmem>>, %arg10: memref<1x8x32xf32, #tpu.memory_space<vmem>>, %arg11: memref<1x8x32xf32, #tpu.memory_space<vmem>>, %arg12: memref<1x8x32xf32, #tpu.memory_space<vmem>>, %arg13: memref<8x32xf32, #tpu.memory_space<vmem>>) attributes {dimension_semantics = [#tpu.dimension_semantics<parallel>, #tpu.dimension_semantics<arbitrary>], iteration_bounds = array<i64: 2, 1>, scalar_prefetch = 0 : i64, scratch_operands = 3 : i64, tpu.core_type = #tpu.core_type<tc>, window_params = [{transform_indices = @transform_0, window_bounds = array<i64: 1, 8, 32>}, {pipeline_mode = #tpu.pipeline_mode<synchronous>, transform_indices = @transform_1, window_bounds = array<i64: 32, 32>}, {pipeline_mode = #tpu.pipeline_mode<synchronous>, transform_indices = @transform_2, window_bounds = array<i64: 32, 32>}, {pipeline_mode = #tpu.pipeline_mode<synchronous>, transform_indices = @transform_3, window_bounds = array<i64: 32, 32>}, {pipeline_mode = #tpu.pipeline_mode<synchronous>, transform_indices = @transform_4, window_bounds = array<i64: 1, 32>}, {pipeline_mode = #tpu.pipeline_mode<synchronous>, transform_indices = @transform_5, window_bounds = array<i64: 1, 32>}, {pipeline_mode = #tpu.pipeline_mode<synchronous>, transform_indices = @transform_6, window_bounds = array<i64: 1, 32>}, {pipeline_mode = #tpu.pipeline_mode<synchronous>, transform_indices = @transform_7, window_bounds = array<i64: 32, 32>}, {transform_indices = @transform_8, window_bounds = array<i64: 1, 8, 32>}]} {
    %c0_i32 = arith.constant 0 : i32
    %0 = arith.cmpi eq, %arg1, %c0_i32 : i32
    %1 = arith.extui %0 : i1 to i32
    %c0_i32_0 = arith.constant 0 : i32
    %2 = arith.cmpi ne, %1, %c0_i32_0 : i32
    scf.if %2 {
      %c0_36 = arith.constant 0 : index
      %c0_37 = arith.constant 0 : index
      %c0_38 = arith.constant 0 : index
      %63 = vector.load %arg2[%c0_36, %c0_37, %c0_38] : memref<1x8x32xf32, #tpu.memory_space<vmem>>, vector<1x8x32xf32>
      %64 = vector.shape_cast %63 : vector<1x8x32xf32> to vector<8x32xf32>
      %c0_39 = arith.constant 0 : index
      %c0_40 = arith.constant 0 : index
      %65 = vector.load %arg4[%c0_39, %c0_40] : memref<32x32xf32, #tpu.memory_space<vmem>>, vector<32x32xf32>
      %cst_41 = arith.constant dense<0.000000e+00> : vector<8x32xf32>
      %66 = tpu.matmul %64, %65, %cst_41 {dimension_numbers = #tpu.dot_dimension_numbers<[1], [0], [0], [1], [0, 0, 1, 1], [], []>} : vector<8x32xf32>, vector<32x32xf32>, vector<8x32xf32> -> vector<8x32xf32>
      %c0_42 = arith.constant 0 : index
      %c0_43 = arith.constant 0 : index
      %67 = vector.load %arg7[%c0_42, %c0_43] : memref<1x32xf32, #tpu.memory_space<vmem>>, vector<1x32xf32>
      %68 = vector.broadcast %67 : vector<1x32xf32> to vector<8x32xf32>
      %69 = arith.addf %66, %68 : vector<8x32xf32>
      %c0_44 = arith.constant 0 : index
      %c0_45 = arith.constant 0 : index
      %70 = vector.load %arg5[%c0_44, %c0_45] : memref<32x32xf32, #tpu.memory_space<vmem>>, vector<32x32xf32>
      %cst_46 = arith.constant dense<0.000000e+00> : vector<8x32xf32>
      %71 = tpu.matmul %64, %70, %cst_46 {dimension_numbers = #tpu.dot_dimension_numbers<[1], [0], [0], [1], [0, 0, 1, 1], [], []>} : vector<8x32xf32>, vector<32x32xf32>, vector<8x32xf32> -> vector<8x32xf32>
      %c0_47 = arith.constant 0 : index
      %c0_48 = arith.constant 0 : index
      %72 = vector.load %arg8[%c0_47, %c0_48] : memref<1x32xf32, #tpu.memory_space<vmem>>, vector<1x32xf32>
      %73 = vector.broadcast %72 : vector<1x32xf32> to vector<8x32xf32>
      %74 = arith.addf %71, %73 : vector<8x32xf32>
      %75 = vector.shape_cast %69 : vector<8x32xf32> to vector<1x8x32xf32>
      %c0_49 = arith.constant 0 : index
      %c0_50 = arith.constant 0 : index
      %c0_51 = arith.constant 0 : index
      %76 = vector.load %arg11[%c0_49, %c0_50, %c0_51] : memref<1x8x32xf32, #tpu.memory_space<vmem>>, vector<1x8x32xf32>
      tpu.vector_store %arg11[%c0_49, %c0_50, %c0_51], %75 {strides = array<i32>} : memref<1x8x32xf32, #tpu.memory_space<vmem>>, vector<1x8x32xf32>,
      %77 = vector.shape_cast %74 : vector<8x32xf32> to vector<1x8x32xf32>
      %c0_52 = arith.constant 0 : index
      %c0_53 = arith.constant 0 : index
      %c0_54 = arith.constant 0 : index
      %78 = vector.load %arg12[%c0_52, %c0_53, %c0_54] : memref<1x8x32xf32, #tpu.memory_space<vmem>>, vector<1x8x32xf32>
      tpu.vector_store %arg12[%c0_52, %c0_53, %c0_54], %77 {strides = array<i32>} : memref<1x8x32xf32, #tpu.memory_space<vmem>>, vector<1x8x32xf32>,
    } else {
    }
    %c8_i32 = arith.constant 8 : i32
    %3 = arith.muli %arg1, %c8_i32 : i32
    %4 = tpu.assume_multiple %3, 8 : i32
    %c0 = arith.constant 0 : index
    %5 = arith.index_cast %4 : i32 to index
    %c0_1 = arith.constant 0 : index
    %6 = vector.load %arg2[%c0, %5, %c0_1] : memref<1x8x32xf32, #tpu.memory_space<vmem>>, vector<1x8x32xf32>
    %7 = vector.shape_cast %6 : vector<1x8x32xf32> to vector<8x32xf32>
    %c0_2 = arith.constant 0 : index
    %c0_3 = arith.constant 0 : index
    %8 = vector.load %arg3[%c0_2, %c0_3] : memref<32x32xf32, #tpu.memory_space<vmem>>, vector<32x32xf32>
    %cst = arith.constant dense<0.000000e+00> : vector<8x32xf32>
    %9 = tpu.matmul %7, %8, %cst {dimension_numbers = #tpu.dot_dimension_numbers<[1], [0], [0], [1], [0, 0, 1, 1], [], []>} : vector<8x32xf32>, vector<32x32xf32>, vector<8x32xf32> -> vector<8x32xf32>
    %c0_4 = arith.constant 0 : index
    %c0_5 = arith.constant 0 : index
    %10 = vector.load %arg6[%c0_4, %c0_5] : memref<1x32xf32, #tpu.memory_space<vmem>>, vector<1x32xf32>
    %11 = vector.broadcast %10 : vector<1x32xf32> to vector<8x32xf32>
    %12 = arith.addf %9, %11 : vector<8x32xf32>
    %cst_6 = arith.constant 0.176776692 : f32
    %13 = vector.broadcast %cst_6 : f32 to vector<8x32xf32>
    %14 = arith.mulf %12, %13 : vector<8x32xf32>
    %15 = vector.extract_strided_slice %14 {offsets = [0, 0], sizes = [8, 8], strides = [1, 1]} : vector<8x32xf32> to vector<8x8xf32>
    %16 = vector.extract_strided_slice %14 {offsets = [0, 8], sizes = [8, 8], strides = [1, 1]} : vector<8x32xf32> to vector<8x8xf32>
    %17 = vector.extract_strided_slice %14 {offsets = [0, 16], sizes = [8, 8], strides = [1, 1]} : vector<8x32xf32> to vector<8x8xf32>
    %18 = vector.extract_strided_slice %14 {offsets = [0, 24], sizes = [8, 8], strides = [1, 1]} : vector<8x32xf32> to vector<8x8xf32>
    %19 = tpu.iota {dimensions = array<i32: 0>} : vector<8x8xi32>
    %20 = tpu.iota {dimensions = array<i32: 1>} : vector<8x8xi32>
    %21 = arith.cmpi sge, %19, %20 : vector<8x8xi32>
    %cst_7 = arith.constant 0.000000e+00 : f32
    %cst_8 = arith.constant -1.000000e+30 : f32
    %22 = vector.broadcast %cst_7 : f32 to vector<8x8xf32>
    %23 = vector.broadcast %cst_8 : f32 to vector<8x8xf32>
    %24 = arith.select %21, %22, %23 : vector<8x8xi1>, vector<8x8xf32>
    %c1_i32 = arith.constant 1 : i32
    %25 = arith.addi %arg1, %c1_i32 : i32
    %cst_9 = arith.constant -1.000000e+30 : f32
    %26 = vector.broadcast %cst_9 : f32 to vector<8x1xf32>
    %cst_10 = arith.constant 0.000000e+00 : f32
    %27 = vector.broadcast %cst_10 : f32 to vector<8x1xf32>
    %cst_11 = arith.constant 0.000000e+00 : f32
    %28 = vector.broadcast %cst_11 : f32 to vector<8x8xf32>
    %cst_12 = arith.constant -1.000000e+30 : f32
    %29 = vector.broadcast %cst_12 : f32 to vector<8x1xf32>
    %cst_13 = arith.constant 0.000000e+00 : f32
    %30 = vector.broadcast %cst_13 : f32 to vector<8x1xf32>
    %cst_14 = arith.constant 0.000000e+00 : f32
    %31 = vector.broadcast %cst_14 : f32 to vector<8x8xf32>
    %cst_15 = arith.constant -1.000000e+30 : f32
    %32 = vector.broadcast %cst_15 : f32 to vector<8x1xf32>
    %cst_16 = arith.constant 0.000000e+00 : f32
    %33 = vector.broadcast %cst_16 : f32 to vector<8x1xf32>
    %cst_17 = arith.constant 0.000000e+00 : f32
    %34 = vector.broadcast %cst_17 : f32 to vector<8x8xf32>
    %cst_18 = arith.constant -1.000000e+30 : f32
    %35 = vector.broadcast %cst_18 : f32 to vector<8x1xf32>
    %cst_19 = arith.constant 0.000000e+00 : f32
    %36 = vector.broadcast %cst_19 : f32 to vector<8x1xf32>
    %cst_20 = arith.constant 0.000000e+00 : f32
    %37 = vector.broadcast %cst_20 : f32 to vector<8x8xf32>
    %c0_i32_21 = arith.constant 0 : i32
    %38 = arith.subi %25, %c0_i32_21 : i32
    %39 = arith.addi %c0_i32_21, %38 : i32
    %c1_i32_22 = arith.constant 1 : i32
    %40:12 = scf.for %arg14 = %c0_i32_21 to %39 step %c1_i32_22 iter_args(%arg15 = %26, %arg16 = %27, %arg17 = %28, %arg18 = %29, %arg19 = %30, %arg20 = %31, %arg21 = %32, %arg22 = %33, %arg23 = %34, %arg24 = %35, %arg25 = %36, %arg26 = %37) -> (vector<8x1xf32>, vector<8x1xf32>, vector<8x8xf32>, vector<8x1xf32>, vector<8x1xf32>, vector<8x8xf32>, vector<8x1xf32>, vector<8x1xf32>, vector<8x8xf32>, vector<8x1xf32>, vector<8x1xf32>, vector<8x8xf32>)  : i32 {
      %63 = arith.index_cast %arg14 : i32 to index
      %c0_36 = arith.constant 0 : index
      %c0_37 = arith.constant 0 : index
      %64 = vector.load %arg11[%63, %c0_36, %c0_37] : memref<1x8x32xf32, #tpu.memory_space<vmem>>, vector<1x8x32xf32>
      %65 = vector.shape_cast %64 : vector<1x8x32xf32> to vector<8x32xf32>
      %66 = arith.index_cast %arg14 : i32 to index
      %c0_38 = arith.constant 0 : index
      %c0_39 = arith.constant 0 : index
      %67 = vector.load %arg12[%66, %c0_38, %c0_39] : memref<1x8x32xf32, #tpu.memory_space<vmem>>, vector<1x8x32xf32>
      %68 = vector.shape_cast %67 : vector<1x8x32xf32> to vector<8x32xf32>
      %69 = arith.cmpi eq, %arg14, %arg1 : i32
      %70 = vector.extract_strided_slice %65 {offsets = [0, 0], sizes = [8, 8], strides = [1, 1]} : vector<8x32xf32> to vector<8x8xf32>
      %cst_40 = arith.constant dense<0.000000e+00> : vector<8x8xf32>
      %71 = tpu.matmul %15, %70, %cst_40 {dimension_numbers = #tpu.dot_dimension_numbers<[1], [1], [0], [0], [0, 0, 1, 0], [], []>} : vector<8x8xf32>, vector<8x8xf32>, vector<8x8xf32> -> vector<8x8xf32>
      %72 = arith.addf %71, %24 : vector<8x8xf32>
      %73 = arith.select %69, %72, %71 : vector<8x8xf32>
      %cst_41 = arith.constant dense<0xFF800000> : vector<8xf32>
      %74 = vector.multi_reduction <maximumf>, %73, %cst_41 [1] : vector<8x8xf32> to vector<8xf32>
      %75 = vector.shape_cast %74 : vector<8xf32> to vector<8x1xf32>
      %76 = arith.maximumf %arg15, %75 : vector<8x1xf32>
      %77 = arith.subf %arg15, %76 : vector<8x1xf32>
      %78 = math.exp %77 : vector<8x1xf32>
      %79 = vector.broadcast %76 : vector<8x1xf32> to vector<8x8xf32>
      %80 = arith.subf %73, %79 : vector<8x8xf32>
      %81 = math.exp %80 : vector<8x8xf32>
      %82 = arith.mulf %78, %arg16 : vector<8x1xf32>
      %cst_42 = arith.constant dense<0.000000e+00> : vector<8xf32>
      %83 = vector.multi_reduction <add>, %81, %cst_42 [1] : vector<8x8xf32> to vector<8xf32>
      %84 = vector.shape_cast %83 : vector<8xf32> to vector<8x1xf32>
      %85 = arith.addf %82, %84 : vector<8x1xf32>
      %86 = vector.broadcast %78 : vector<8x1xf32> to vector<8x8xf32>
      %87 = arith.mulf %86, %arg17 : vector<8x8xf32>
      %88 = vector.extract_strided_slice %68 {offsets = [0, 0], sizes = [8, 8], strides = [1, 1]} : vector<8x32xf32> to vector<8x8xf32>
      %cst_43 = arith.constant dense<0.000000e+00> : vector<8x8xf32>
      %89 = tpu.matmul %81, %88, %cst_43 {dimension_numbers = #tpu.dot_dimension_numbers<[1], [0], [0], [1], [0, 0, 1, 1], [], []>} : vector<8x8xf32>, vector<8x8xf32>, vector<8x8xf32> -> vector<8x8xf32>
      %90 = arith.addf %87, %89 : vector<8x8xf32>
      %91 = vector.extract_strided_slice %65 {offsets = [0, 8], sizes = [8, 8], strides = [1, 1]} : vector<8x32xf32> to vector<8x8xf32>
      %cst_44 = arith.constant dense<0.000000e+00> : vector<8x8xf32>
      %92 = tpu.matmul %16, %91, %cst_44 {dimension_numbers = #tpu.dot_dimension_numbers<[1], [1], [0], [0], [0, 0, 1, 0], [], []>} : vector<8x8xf32>, vector<8x8xf32>, vector<8x8xf32> -> vector<8x8xf32>
      %93 = arith.addf %92, %24 : vector<8x8xf32>
      %94 = arith.select %69, %93, %92 : vector<8x8xf32>
      %cst_45 = arith.constant dense<0xFF800000> : vector<8xf32>
      %95 = vector.multi_reduction <maximumf>, %94, %cst_45 [1] : vector<8x8xf32> to vector<8xf32>
      %96 = vector.shape_cast %95 : vector<8xf32> to vector<8x1xf32>
      %97 = arith.maximumf %arg18, %96 : vector<8x1xf32>
      %98 = arith.subf %arg18, %97 : vector<8x1xf32>
      %99 = math.exp %98 : vector<8x1xf32>
      %100 = vector.broadcast %97 : vector<8x1xf32> to vector<8x8xf32>
      %101 = arith.subf %94, %100 : vector<8x8xf32>
      %102 = math.exp %101 : vector<8x8xf32>
      %103 = arith.mulf %99, %arg19 : vector<8x1xf32>
      %cst_46 = arith.constant dense<0.000000e+00> : vector<8xf32>
      %104 = vector.multi_reduction <add>, %102, %cst_46 [1] : vector<8x8xf32> to vector<8xf32>
      %105 = vector.shape_cast %104 : vector<8xf32> to vector<8x1xf32>
      %106 = arith.addf %103, %105 : vector<8x1xf32>
      %107 = vector.broadcast %99 : vector<8x1xf32> to vector<8x8xf32>
      %108 = arith.mulf %107, %arg20 : vector<8x8xf32>
      %109 = vector.extract_strided_slice %68 {offsets = [0, 8], sizes = [8, 8], strides = [1, 1]} : vector<8x32xf32> to vector<8x8xf32>
      %cst_47 = arith.constant dense<0.000000e+00> : vector<8x8xf32>
      %110 = tpu.matmul %102, %109, %cst_47 {dimension_numbers = #tpu.dot_dimension_numbers<[1], [0], [0], [1], [0, 0, 1, 1], [], []>} : vector<8x8xf32>, vector<8x8xf32>, vector<8x8xf32> -> vector<8x8xf32>
      %111 = arith.addf %108, %110 : vector<8x8xf32>
      %112 = vector.extract_strided_slice %65 {offsets = [0, 16], sizes = [8, 8], strides = [1, 1]} : vector<8x32xf32> to vector<8x8xf32>
      %cst_48 = arith.constant dense<0.000000e+00> : vector<8x8xf32>
      %113 = tpu.matmul %17, %112, %cst_48 {dimension_numbers = #tpu.dot_dimension_numbers<[1], [1], [0], [0], [0, 0, 1, 0], [], []>} : vector<8x8xf32>, vector<8x8xf32>, vector<8x8xf32> -> vector<8x8xf32>
      %114 = arith.addf %113, %24 : vector<8x8xf32>
      %115 = arith.select %69, %114, %113 : vector<8x8xf32>
      %cst_49 = arith.constant dense<0xFF800000> : vector<8xf32>
      %116 = vector.multi_reduction <maximumf>, %115, %cst_49 [1] : vector<8x8xf32> to vector<8xf32>
      %117 = vector.shape_cast %116 : vector<8xf32> to vector<8x1xf32>
      %118 = arith.maximumf %arg21, %117 : vector<8x1xf32>
      %119 = arith.subf %arg21, %118 : vector<8x1xf32>
      %120 = math.exp %119 : vector<8x1xf32>
      %121 = vector.broadcast %118 : vector<8x1xf32> to vector<8x8xf32>
      %122 = arith.subf %115, %121 : vector<8x8xf32>
      %123 = math.exp %122 : vector<8x8xf32>
      %124 = arith.mulf %120, %arg22 : vector<8x1xf32>
      %cst_50 = arith.constant dense<0.000000e+00> : vector<8xf32>
      %125 = vector.multi_reduction <add>, %123, %cst_50 [1] : vector<8x8xf32> to vector<8xf32>
      %126 = vector.shape_cast %125 : vector<8xf32> to vector<8x1xf32>
      %127 = arith.addf %124, %126 : vector<8x1xf32>
      %128 = vector.broadcast %120 : vector<8x1xf32> to vector<8x8xf32>
      %129 = arith.mulf %128, %arg23 : vector<8x8xf32>
      %130 = vector.extract_strided_slice %68 {offsets = [0, 16], sizes = [8, 8], strides = [1, 1]} : vector<8x32xf32> to vector<8x8xf32>
      %cst_51 = arith.constant dense<0.000000e+00> : vector<8x8xf32>
      %131 = tpu.matmul %123, %130, %cst_51 {dimension_numbers = #tpu.dot_dimension_numbers<[1], [0], [0], [1], [0, 0, 1, 1], [], []>} : vector<8x8xf32>, vector<8x8xf32>, vector<8x8xf32> -> vector<8x8xf32>
      %132 = arith.addf %129, %131 : vector<8x8xf32>
      %133 = vector.extract_strided_slice %65 {offsets = [0, 24], sizes = [8, 8], strides = [1, 1]} : vector<8x32xf32> to vector<8x8xf32>
      %cst_52 = arith.constant dense<0.000000e+00> : vector<8x8xf32>
      %134 = tpu.matmul %18, %133, %cst_52 {dimension_numbers = #tpu.dot_dimension_numbers<[1], [1], [0], [0], [0, 0, 1, 0], [], []>} : vector<8x8xf32>, vector<8x8xf32>, vector<8x8xf32> -> vector<8x8xf32>
      %135 = arith.addf %134, %24 : vector<8x8xf32>
      %136 = arith.select %69, %135, %134 : vector<8x8xf32>
      %cst_53 = arith.constant dense<0xFF800000> : vector<8xf32>
      %137 = vector.multi_reduction <maximumf>, %136, %cst_53 [1] : vector<8x8xf32> to vector<8xf32>
      %138 = vector.shape_cast %137 : vector<8xf32> to vector<8x1xf32>
      %139 = arith.maximumf %arg24, %138 : vector<8x1xf32>
      %140 = arith.subf %arg24, %139 : vector<8x1xf32>
      %141 = math.exp %140 : vector<8x1xf32>
      %142 = vector.broadcast %139 : vector<8x1xf32> to vector<8x8xf32>
      %143 = arith.subf %136, %142 : vector<8x8xf32>
      %144 = math.exp %143 : vector<8x8xf32>
      %145 = arith.mulf %141, %arg25 : vector<8x1xf32>
      %cst_54 = arith.constant dense<0.000000e+00> : vector<8xf32>
      %146 = vector.multi_reduction <add>, %144, %cst_54 [1] : vector<8x8xf32> to vector<8xf32>
      %147 = vector.shape_cast %146 : vector<8xf32> to vector<8x1xf32>
      %148 = arith.addf %145, %147 : vector<8x1xf32>
      %149 = vector.broadcast %141 : vector<8x1xf32> to vector<8x8xf32>
      %150 = arith.mulf %149, %arg26 : vector<8x8xf32>
      %151 = vector.extract_strided_slice %68 {offsets = [0, 24], sizes = [8, 8], strides = [1, 1]} : vector<8x32xf32> to vector<8x8xf32>
      %cst_55 = arith.constant dense<0.000000e+00> : vector<8x8xf32>
      %152 = tpu.matmul %144, %151, %cst_55 {dimension_numbers = #tpu.dot_dimension_numbers<[1], [0], [0], [1], [0, 0, 1, 1], [], []>} : vector<8x8xf32>, vector<8x8xf32>, vector<8x8xf32> -> vector<8x8xf32>
      %153 = arith.addf %150, %152 : vector<8x8xf32>
      scf.yield %76, %85, %90, %97, %106, %111, %118, %127, %132, %139, %148, %153 : vector<8x1xf32>, vector<8x1xf32>, vector<8x8xf32>, vector<8x1xf32>, vector<8x1xf32>, vector<8x8xf32>, vector<8x1xf32>, vector<8x1xf32>, vector<8x8xf32>, vector<8x1xf32>, vector<8x1xf32>, vector<8x8xf32>
    }
    %41 = tpu.reciprocal %40#1 {approx = true} : vector<8x1xf32> -> vector<8x1xf32>
    %42 = vector.broadcast %41 : vector<8x1xf32> to vector<8x8xf32>
    %43 = arith.mulf %40#2, %42 : vector<8x8xf32>
    %c0_23 = arith.constant 0 : index
    %c0_24 = arith.constant 0 : index
    %44 = vector.load %arg13[%c0_23, %c0_24] : memref<8x32xf32, #tpu.memory_space<vmem>>, vector<8x8xf32>
    tpu.vector_store %arg13[%c0_23, %c0_24], %43 {strides = array<i32>} : memref<8x32xf32, #tpu.memory_space<vmem>>, vector<8x8xf32>,
    %45 = tpu.reciprocal %40#4 {approx = true} : vector<8x1xf32> -> vector<8x1xf32>
    %46 = vector.broadcast %45 : vector<8x1xf32> to vector<8x8xf32>
    %47 = arith.mulf %40#5, %46 : vector<8x8xf32>
    %c0_25 = arith.constant 0 : index
    %c8 = arith.constant 8 : index
    %48 = vector.load %arg13[%c0_25, %c8] : memref<8x32xf32, #tpu.memory_space<vmem>>, vector<8x8xf32>
    tpu.vector_store %arg13[%c0_25, %c8], %47 {strides = array<i32>} : memref<8x32xf32, #tpu.memory_space<vmem>>, vector<8x8xf32>,
    %49 = tpu.reciprocal %40#7 {approx = true} : vector<8x1xf32> -> vector<8x1xf32>
    %50 = vector.broadcast %49 : vector<8x1xf32> to vector<8x8xf32>
    %51 = arith.mulf %40#8, %50 : vector<8x8xf32>
    %c0_26 = arith.constant 0 : index
    %c16 = arith.constant 16 : index
    %52 = vector.load %arg13[%c0_26, %c16] : memref<8x32xf32, #tpu.memory_space<vmem>>, vector<8x8xf32>
    tpu.vector_store %arg13[%c0_26, %c16], %51 {strides = array<i32>} : memref<8x32xf32, #tpu.memory_space<vmem>>, vector<8x8xf32>,
    %53 = tpu.reciprocal %40#10 {approx = true} : vector<8x1xf32> -> vector<8x1xf32>
    %54 = vector.broadcast %53 : vector<8x1xf32> to vector<8x8xf32>
    %55 = arith.mulf %40#11, %54 : vector<8x8xf32>
    %c0_27 = arith.constant 0 : index
    %c24 = arith.constant 24 : index
    %56 = vector.load %arg13[%c0_27, %c24] : memref<8x32xf32, #tpu.memory_space<vmem>>, vector<8x8xf32>
    tpu.vector_store %arg13[%c0_27, %c24], %55 {strides = array<i32>} : memref<8x32xf32, #tpu.memory_space<vmem>>, vector<8x8xf32>,
    %c0_28 = arith.constant 0 : index
    %c0_29 = arith.constant 0 : index
    %57 = vector.load %arg13[%c0_28, %c0_29] : memref<8x32xf32, #tpu.memory_space<vmem>>, vector<8x32xf32>
    %c0_30 = arith.constant 0 : index
    %c0_31 = arith.constant 0 : index
    %58 = vector.load %arg9[%c0_30, %c0_31] : memref<32x32xf32, #tpu.memory_space<vmem>>, vector<32x32xf32>
    %cst_32 = arith.constant dense<0.000000e+00> : vector<8x32xf32>
    %59 = tpu.matmul %57, %58, %cst_32 {dimension_numbers = #tpu.dot_dimension_numbers<[1], [0], [0], [1], [0, 0, 1, 1], [], []>} : vector<8x32xf32>, vector<32x32xf32>, vector<8x32xf32> -> vector<8x32xf32>
    %c0_33 = arith.constant 0 : index
    %c0_34 = arith.constant 0 : index
    %c0_35 = arith.constant 0 : index
    %60 = vector.load %arg10[%c0_33, %c0_34, %c0_35] : memref<1x8x32xf32, #tpu.memory_space<vmem>>, vector<1x8x32xf32>
    %61 = vector.shape_cast %60 : vector<1x8x32xf32> to vector<8x32xf32>
    %62 = vector.shape_cast %59 : vector<8x32xf32> to vector<1x8x32xf32>
    tpu.vector_store %arg10[%c0_33, %c0_34, %c0_35], %62 {strides = array<i32>} : memref<1x8x32xf32, #tpu.memory_space<vmem>>, vector<1x8x32xf32>,
    return
  }
  func.func @transform_0(%arg0: i32, %arg1: i32) -> (i32, i32, i32) {
    %c0_i32 = arith.constant 0 : i32
    %c0_i32_0 = arith.constant 0 : i32
    %c0_i32_1 = arith.constant 0 : i32
    return %arg0, %c0_i32, %c0_i32_0 : i32, i32, i32
  }
  func.func @transform_1(%arg0: i32, %arg1: i32) -> (i32, i32) {
    %c0_i32 = arith.constant 0 : i32
    %c0_i32_0 = arith.constant 0 : i32
    %c0_i32_1 = arith.constant 0 : i32
    return %c0_i32, %c0_i32_0 : i32, i32
  }
  func.func @transform_2(%arg0: i32, %arg1: i32) -> (i32, i32) {
    %c0_i32 = arith.constant 0 : i32
    %c0_i32_0 = arith.constant 0 : i32
    %c0_i32_1 = arith.constant 0 : i32
    return %c0_i32, %c0_i32_0 : i32, i32
  }
  func.func @transform_3(%arg0: i32, %arg1: i32) -> (i32, i32) {
    %c0_i32 = arith.constant 0 : i32
    %c0_i32_0 = arith.constant 0 : i32
    %c0_i32_1 = arith.constant 0 : i32
    return %c0_i32, %c0_i32_0 : i32, i32
  }
  func.func @transform_4(%arg0: i32, %arg1: i32) -> (i32, i32) {
    %c0_i32 = arith.constant 0 : i32
    %c0_i32_0 = arith.constant 0 : i32
    %c0_i32_1 = arith.constant 0 : i32
    return %c0_i32, %c0_i32_0 : i32, i32
  }
  func.func @transform_5(%arg0: i32, %arg1: i32) -> (i32, i32) {
    %c0_i32 = arith.constant 0 : i32
    %c0_i32_0 = arith.constant 0 : i32
    %c0_i32_1 = arith.constant 0 : i32
    return %c0_i32, %c0_i32_0 : i32, i32
  }
  func.func @transform_6(%arg0: i32, %arg1: i32) -> (i32, i32) {
    %c0_i32 = arith.constant 0 : i32
    %c0_i32_0 = arith.constant 0 : i32
    %c0_i32_1 = arith.constant 0 : i32
    return %c0_i32, %c0_i32_0 : i32, i32
  }
  func.func @transform_7(%arg0: i32, %arg1: i32) -> (i32, i32) {
    %c0_i32 = arith.constant 0 : i32
    %c0_i32_0 = arith.constant 0 : i32
    %c0_i32_1 = arith.constant 0 : i32
    return %c0_i32, %c0_i32_0 : i32, i32
  }
  func.func @transform_8(%arg0: i32, %arg1: i32) -> (i32, i32, i32) {
    %c0_i32 = arith.constant 0 : i32
    %c0_i32_0 = arith.constant 0 : i32
    return %arg0, %arg1, %c0_i32 : i32, i32, i32
  }
}

module attributes {stable_mosaic.version = 11 : i64} {
  func.func @_mha_kernel(%arg0: i32, %arg1: i32, %arg2: memref<1x8x32xf32, #tpu.memory_space<vmem>>, %arg3: memref<32x32xf32, #tpu.memory_space<vmem>>, %arg4: memref<32x32xf32, #tpu.memory_space<vmem>>, %arg5: memref<32x32xf32, #tpu.memory_space<vmem>>, %arg6: memref<1x32xf32, #tpu.memory_space<vmem>>, %arg7: memref<1x32xf32, #tpu.memory_space<vmem>>, %arg8: memref<1x32xf32, #tpu.memory_space<vmem>>, %arg9: memref<32x32xf32, #tpu.memory_space<vmem>>, %arg10: memref<1x8x32xf32, #tpu.memory_space<vmem>>, %arg11: memref<1x8x32xf32, #tpu.memory_space<vmem>>, %arg12: memref<1x8x32xf32, #tpu.memory_space<vmem>>, %arg13: memref<8x32xf32, #tpu.memory_space<vmem>>) attributes {dimension_semantics = [#tpu.dimension_semantics<parallel>, #tpu.dimension_semantics<arbitrary>], iteration_bounds = array<i64: 2, 1>, scalar_prefetch = 0 : i64, scratch_operands = 3 : i64, tpu.core_type = #tpu.core_type<tc>, window_params = [{transform_indices = @transform_0, window_bounds = array<i64: 1, 8, 32>}, {pipeline_mode = #tpu.pipeline_mode<synchronous>, transform_indices = @transform_1, window_bounds = array<i64: 32, 32>}, {pipeline_mode = #tpu.pipeline_mode<synchronous>, transform_indices = @transform_2, window_bounds = array<i64: 32, 32>}, {pipeline_mode = #tpu.pipeline_mode<synchronous>, transform_indices = @transform_3, window_bounds = array<i64: 32, 32>}, {pipeline_mode = #tpu.pipeline_mode<synchronous>, transform_indices = @transform_4, window_bounds = array<i64: 1, 32>}, {pipeline_mode = #tpu.pipeline_mode<synchronous>, transform_indices = @transform_5, window_bounds = array<i64: 1, 32>}, {pipeline_mode = #tpu.pipeline_mode<synchronous>, transform_indices = @transform_6, window_bounds = array<i64: 1, 32>}, {pipeline_mode = #tpu.pipeline_mode<synchronous>, transform_indices = @transform_7, window_bounds = array<i64: 32, 32>}, {transform_indices = @transform_8, window_bounds = array<i64: 1, 8, 32>}]} {
    %c0_i32 = arith.constant 0 : i32
    %0 = arith.cmpi eq, %arg1, %c0_i32 : i32
    %1 = arith.extui %0 : i1 to i32
    %c0_i32_0 = arith.constant 0 : i32
    %2 = arith.cmpi ne, %1, %c0_i32_0 : i32
    scf.if %2 {
      %c0_36 = arith.constant 0 : index
      %c0_37 = arith.constant 0 : index
      %c0_38 = arith.constant 0 : index
      %63 = vector.load %arg2[%c0_36, %c0_37, %c0_38] : memref<1x8x32xf32, #tpu.memory_space<vmem>>, vector<1x8x32xf32>
      %64 = vector.shape_cast %63 : vector<1x8x32xf32> to vector<8x32xf32>
      %c0_39 = arith.constant 0 : index
      %c0_40 = arith.constant 0 : index
      %65 = vector.load %arg4[%c0_39, %c0_40] : memref<32x32xf32, #tpu.memory_space<vmem>>, vector<32x32xf32>
      %cst_41 = arith.constant dense<0.000000e+00> : vector<8x32xf32>
      %66 = tpu.matmul %64, %65, %cst_41 {dimension_numbers = #tpu.dot_dimension_numbers<[1], [0], [0], [1], [0, 0, 1, 1], [], []>} : vector<8x32xf32>, vector<32x32xf32>, vector<8x32xf32> -> vector<8x32xf32>
      %c0_42 = arith.constant 0 : index
      %c0_43 = arith.constant 0 : index
      %67 = vector.load %arg7[%c0_42, %c0_43] : memref<1x32xf32, #tpu.memory_space<vmem>>, vector<1x32xf32>
      %68 = vector.broadcast %67 : vector<1x32xf32> to vector<8x32xf32>
      %69 = arith.addf %66, %68 : vector<8x32xf32>
      %c0_44 = arith.constant 0 : index
      %c0_45 = arith.constant 0 : index
      %70 = vector.load %arg5[%c0_44, %c0_45] : memref<32x32xf32, #tpu.memory_space<vmem>>, vector<32x32xf32>
      %cst_46 = arith.constant dense<0.000000e+00> : vector<8x32xf32>
      %71 = tpu.matmul %64, %70, %cst_46 {dimension_numbers = #tpu.dot_dimension_numbers<[1], [0], [0], [1], [0, 0, 1, 1], [], []>} : vector<8x32xf32>, vector<32x32xf32>, vector<8x32xf32> -> vector<8x32xf32>
      %c0_47 = arith.constant 0 : index
      %c0_48 = arith.constant 0 : index
      %72 = vector.load %arg8[%c0_47, %c0_48] : memref<1x32xf32, #tpu.memory_space<vmem>>, vector<1x32xf32>
      %73 = vector.broadcast %72 : vector<1x32xf32> to vector<8x32xf32>
      %74 = arith.addf %71, %73 : vector<8x32xf32>
      %75 = vector.shape_cast %69 : vector<8x32xf32> to vector<1x8x32xf32>
      %c0_49 = arith.constant 0 : index
      %c0_50 = arith.constant 0 : index
      %c0_51 = arith.constant 0 : index
      %76 = vector.load %arg11[%c0_49, %c0_50, %c0_51] : memref<1x8x32xf32, #tpu.memory_space<vmem>>, vector<1x8x32xf32>
      tpu.vector_store %arg11[%c0_49, %c0_50, %c0_51], %75 {strides = array<i32>} : memref<1x8x32xf32, #tpu.memory_space<vmem>>, vector<1x8x32xf32>,
      %77 = vector.shape_cast %74 : vector<8x32xf32> to vector<1x8x32xf32>
      %c0_52 = arith.constant 0 : index
      %c0_53 = arith.constant 0 : index
      %c0_54 = arith.constant 0 : index
      %78 = vector.load %arg12[%c0_52, %c0_53, %c0_54] : memref<1x8x32xf32, #tpu.memory_space<vmem>>, vector<1x8x32xf32>
      tpu.vector_store %arg12[%c0_52, %c0_53, %c0_54], %77 {strides = array<i32>} : memref<1x8x32xf32, #tpu.memory_space<vmem>>, vector<1x8x32xf32>,
    } else {
    }
    %c8_i32 = arith.constant 8 : i32
    %3 = arith.muli %arg1, %c8_i32 : i32
    %4 = tpu.assume_multiple %3, 8 : i32
    %c0 = arith.constant 0 : index
    %5 = arith.index_cast %4 : i32 to index
    %c0_1 = arith.constant 0 : index
    %6 = vector.load %arg2[%c0, %5, %c0_1] : memref<1x8x32xf32, #tpu.memory_space<vmem>>, vector<1x8x32xf32>
    %7 = vector.shape_cast %6 : vector<1x8x32xf32> to vector<8x32xf32>
    %c0_2 = arith.constant 0 : index
    %c0_3 = arith.constant 0 : index
    %8 = vector.load %arg3[%c0_2, %c0_3] : memref<32x32xf32, #tpu.memory_space<vmem>>, vector<32x32xf32>
    %cst = arith.constant dense<0.000000e+00> : vector<8x32xf32>
    %9 = tpu.matmul %7, %8, %cst {dimension_numbers = #tpu.dot_dimension_numbers<[1], [0], [0], [1], [0, 0, 1, 1], [], []>} : vector<8x32xf32>, vector<32x32xf32>, vector<8x32xf32> -> vector<8x32xf32>
    %c0_4 = arith.constant 0 : index
    %c0_5 = arith.constant 0 : index
    %10 = vector.load %arg6[%c0_4, %c0_5] : memref<1x32xf32, #tpu.memory_space<vmem>>, vector<1x32xf32>
    %11 = vector.broadcast %10 : vector<1x32xf32> to vector<8x32xf32>
    %12 = arith.addf %9, %11 : vector<8x32xf32>
    %cst_6 = arith.constant 0.176776692 : f32
    %13 = vector.broadcast %cst_6 : f32 to vector<8x32xf32>
    %14 = arith.mulf %12, %13 : vector<8x32xf32>
    %15 = vector.extract_strided_slice %14 {offsets = [0, 0], sizes = [8, 8], strides = [1, 1]} : vector<8x32xf32> to vector<8x8xf32>
    %16 = vector.extract_strided_slice %14 {offsets = [0, 8], sizes = [8, 8], strides = [1, 1]} : vector<8x32xf32> to vector<8x8xf32>
    %17 = vector.extract_strided_slice %14 {offsets = [0, 16], sizes = [8, 8], strides = [1, 1]} : vector<8x32xf32> to vector<8x8xf32>
    %18 = vector.extract_strided_slice %14 {offsets = [0, 24], sizes = [8, 8], strides = [1, 1]} : vector<8x32xf32> to vector<8x8xf32>
    %19 = tpu.iota {dimensions = array<i32: 0>} : vector<8x8xi32>
    %20 = tpu.iota {dimensions = array<i32: 1>} : vector<8x8xi32>
    %21 = arith.cmpi sge, %19, %20 : vector<8x8xi32>
    %cst_7 = arith.constant 0.000000e+00 : f32
    %cst_8 = arith.constant -1.000000e+30 : f32
    %22 = vector.broadcast %cst_7 : f32 to vector<8x8xf32>
    %23 = vector.broadcast %cst_8 : f32 to vector<8x8xf32>
    %24 = arith.select %21, %22, %23 : vector<8x8xi1>, vector<8x8xf32>
    %c1_i32 = arith.constant 1 : i32
    %25 = arith.addi %arg1, %c1_i32 : i32
    %cst_9 = arith.constant -1.000000e+30 : f32
    %26 = vector.broadcast %cst_9 : f32 to vector<8x1xf32>
    %cst_10 = arith.constant 0.000000e+00 : f32
    %27 = vector.broadcast %cst_10 : f32 to vector<8x1xf32>
    %cst_11 = arith.constant 0.000000e+00 : f32
    %28 = vector.broadcast %cst_11 : f32 to vector<8x8xf32>
    %cst_12 = arith.constant -1.000000e+30 : f32
    %29 = vector.broadcast %cst_12 : f32 to vector<8x1xf32>
    %cst_13 = arith.constant 0.000000e+00 : f32
    %30 = vector.broadcast %cst_13 : f32 to vector<8x1xf32>
    %cst_14 = arith.constant 0.000000e+00 : f32
    %31 = vector.broadcast %cst_14 : f32 to vector<8x8xf32>
    %cst_15 = arith.constant -1.000000e+30 : f32
    %32 = vector.broadcast %cst_15 : f32 to vector<8x1xf32>
    %cst_16 = arith.constant 0.000000e+00 : f32
    %33 = vector.broadcast %cst_16 : f32 to vector<8x1xf32>
    %cst_17 = arith.constant 0.000000e+00 : f32
    %34 = vector.broadcast %cst_17 : f32 to vector<8x8xf32>
    %cst_18 = arith.constant -1.000000e+30 : f32
    %35 = vector.broadcast %cst_18 : f32 to vector<8x1xf32>
    %cst_19 = arith.constant 0.000000e+00 : f32
    %36 = vector.broadcast %cst_19 : f32 to vector<8x1xf32>
    %cst_20 = arith.constant 0.000000e+00 : f32
    %37 = vector.broadcast %cst_20 : f32 to vector<8x8xf32>
    %c0_i32_21 = arith.constant 0 : i32
    %38 = arith.subi %25, %c0_i32_21 : i32
    %39 = arith.addi %c0_i32_21, %38 : i32
    %c1_i32_22 = arith.constant 1 : i32
    %40:12 = scf.for %arg14 = %c0_i32_21 to %39 step %c1_i32_22 iter_args(%arg15 = %26, %arg16 = %27, %arg17 = %28, %arg18 = %29, %arg19 = %30, %arg20 = %31, %arg21 = %32, %arg22 = %33, %arg23 = %34, %arg24 = %35, %arg25 = %36, %arg26 = %37) -> (vector<8x1xf32>, vector<8x1xf32>, vector<8x8xf32>, vector<8x1xf32>, vector<8x1xf32>, vector<8x8xf32>, vector<8x1xf32>, vector<8x1xf32>, vector<8x8xf32>, vector<8x1xf32>, vector<8x1xf32>, vector<8x8xf32>)  : i32 {
      %63 = arith.index_cast %arg14 : i32 to index
      %c0_36 = arith.constant 0 : index
      %c0_37 = arith.constant 0 : index
      %64 = vector.load %arg11[%63, %c0_36, %c0_37] : memref<1x8x32xf32, #tpu.memory_space<vmem>>, vector<1x8x32xf32>
      %65 = vector.shape_cast %64 : vector<1x8x32xf32> to vector<8x32xf32>
      %66 = arith.index_cast %arg14 : i32 to index
      %c0_38 = arith.constant 0 : index
      %c0_39 = arith.constant 0 : index
      %67 = vector.load %arg12[%66, %c0_38, %c0_39] : memref<1x8x32xf32, #tpu.memory_space<vmem>>, vector<1x8x32xf32>
      %68 = vector.shape_cast %67 : vector<1x8x32xf32> to vector<8x32xf32>
      %69 = arith.cmpi eq, %arg14, %arg1 : i32
      %70 = vector.extract_strided_slice %65 {offsets = [0, 0], sizes = [8, 8], strides = [1, 1]} : vector<8x32xf32> to vector<8x8xf32>
      %cst_40 = arith.constant dense<0.000000e+00> : vector<8x8xf32>
      %71 = tpu.matmul %15, %70, %cst_40 {dimension_numbers = #tpu.dot_dimension_numbers<[1], [1], [0], [0], [0, 0, 1, 0], [], []>} : vector<8x8xf32>, vector<8x8xf32>, vector<8x8xf32> -> vector<8x8xf32>
      %72 = arith.addf %71, %24 : vector<8x8xf32>
      %73 = arith.select %69, %72, %71 : vector<8x8xf32>
      %cst_41 = arith.constant dense<0xFF800000> : vector<8xf32>
      %74 = vector.multi_reduction <maximumf>, %73, %cst_41 [1] : vector<8x8xf32> to vector<8xf32>
      %75 = vector.shape_cast %74 : vector<8xf32> to vector<8x1xf32>
      %76 = arith.maximumf %arg15, %75 : vector<8x1xf32>
      %77 = arith.subf %arg15, %76 : vector<8x1xf32>
      %78 = math.exp %77 : vector<8x1xf32>
      %79 = vector.broadcast %76 : vector<8x1xf32> to vector<8x8xf32>
      %80 = arith.subf %73, %79 : vector<8x8xf32>
      %81 = math.exp %80 : vector<8x8xf32>
      %82 = arith.mulf %78, %arg16 : vector<8x1xf32>
      %cst_42 = arith.constant dense<0.000000e+00> : vector<8xf32>
      %83 = vector.multi_reduction <add>, %81, %cst_42 [1] : vector<8x8xf32> to vector<8xf32>
      %84 = vector.shape_cast %83 : vector<8xf32> to vector<8x1xf32>
      %85 = arith.addf %82, %84 : vector<8x1xf32>
      %86 = vector.broadcast %78 : vector<8x1xf32> to vector<8x8xf32>
      %87 = arith.mulf %86, %arg17 : vector<8x8xf32>
      %88 = vector.extract_strided_slice %68 {offsets = [0, 0], sizes = [8, 8], strides = [1, 1]} : vector<8x32xf32> to vector<8x8xf32>
      %cst_43 = arith.constant dense<0.000000e+00> : vector<8x8xf32>
      %89 = tpu.matmul %81, %88, %cst_43 {dimension_numbers = #tpu.dot_dimension_numbers<[1], [0], [0], [1], [0, 0, 1, 1], [], []>} : vector<8x8xf32>, vector<8x8xf32>, vector<8x8xf32> -> vector<8x8xf32>
      %90 = arith.addf %87, %89 : vector<8x8xf32>
      %91 = vector.extract_strided_slice %65 {offsets = [0, 8], sizes = [8, 8], strides = [1, 1]} : vector<8x32xf32> to vector<8x8xf32>
      %cst_44 = arith.constant dense<0.000000e+00> : vector<8x8xf32>
      %92 = tpu.matmul %16, %91, %cst_44 {dimension_numbers = #tpu.dot_dimension_numbers<[1], [1], [0], [0], [0, 0, 1, 0], [], []>} : vector<8x8xf32>, vector<8x8xf32>, vector<8x8xf32> -> vector<8x8xf32>
      %93 = arith.addf %92, %24 : vector<8x8xf32>
      %94 = arith.select %69, %93, %92 : vector<8x8xf32>
      %cst_45 = arith.constant dense<0xFF800000> : vector<8xf32>
      %95 = vector.multi_reduction <maximumf>, %94, %cst_45 [1] : vector<8x8xf32> to vector<8xf32>
      %96 = vector.shape_cast %95 : vector<8xf32> to vector<8x1xf32>
      %97 = arith.maximumf %arg18, %96 : vector<8x1xf32>
      %98 = arith.subf %arg18, %97 : vector<8x1xf32>
      %99 = math.exp %98 : vector<8x1xf32>
      %100 = vector.broadcast %97 : vector<8x1xf32> to vector<8x8xf32>
      %101 = arith.subf %94, %100 : vector<8x8xf32>
      %102 = math.exp %101 : vector<8x8xf32>
      %103 = arith.mulf %99, %arg19 : vector<8x1xf32>
      %cst_46 = arith.constant dense<0.000000e+00> : vector<8xf32>
      %104 = vector.multi_reduction <add>, %102, %cst_46 [1] : vector<8x8xf32> to vector<8xf32>
      %105 = vector.shape_cast %104 : vector<8xf32> to vector<8x1xf32>
      %106 = arith.addf %103, %105 : vector<8x1xf32>
      %107 = vector.broadcast %99 : vector<8x1xf32> to vector<8x8xf32>
      %108 = arith.mulf %107, %arg20 : vector<8x8xf32>
      %109 = vector.extract_strided_slice %68 {offsets = [0, 8], sizes = [8, 8], strides = [1, 1]} : vector<8x32xf32> to vector<8x8xf32>
      %cst_47 = arith.constant dense<0.000000e+00> : vector<8x8xf32>
      %110 = tpu.matmul %102, %109, %cst_47 {dimension_numbers = #tpu.dot_dimension_numbers<[1], [0], [0], [1], [0, 0, 1, 1], [], []>} : vector<8x8xf32>, vector<8x8xf32>, vector<8x8xf32> -> vector<8x8xf32>
      %111 = arith.addf %108, %110 : vector<8x8xf32>
      %112 = vector.extract_strided_slice %65 {offsets = [0, 16], sizes = [8, 8], strides = [1, 1]} : vector<8x32xf32> to vector<8x8xf32>
      %cst_48 = arith.constant dense<0.000000e+00> : vector<8x8xf32>
      %113 = tpu.matmul %17, %112, %cst_48 {dimension_numbers = #tpu.dot_dimension_numbers<[1], [1], [0], [0], [0, 0, 1, 0], [], []>} : vector<8x8xf32>, vector<8x8xf32>, vector<8x8xf32> -> vector<8x8xf32>
      %114 = arith.addf %113, %24 : vector<8x8xf32>
      %115 = arith.select %69, %114, %113 : vector<8x8xf32>
      %cst_49 = arith.constant dense<0xFF800000> : vector<8xf32>
      %116 = vector.multi_reduction <maximumf>, %115, %cst_49 [1] : vector<8x8xf32> to vector<8xf32>
      %117 = vector.shape_cast %116 : vector<8xf32> to vector<8x1xf32>
      %118 = arith.maximumf %arg21, %117 : vector<8x1xf32>
      %119 = arith.subf %arg21, %118 : vector<8x1xf32>
      %120 = math.exp %119 : vector<8x1xf32>
      %121 = vector.broadcast %118 : vector<8x1xf32> to vector<8x8xf32>
      %122 = arith.subf %115, %121 : vector<8x8xf32>
      %123 = math.exp %122 : vector<8x8xf32>
      %124 = arith.mulf %120, %arg22 : vector<8x1xf32>
      %cst_50 = arith.constant dense<0.000000e+00> : vector<8xf32>
      %125 = vector.multi_reduction <add>, %123, %cst_50 [1] : vector<8x8xf32> to vector<8xf32>
      %126 = vector.shape_cast %125 : vector<8xf32> to vector<8x1xf32>
      %127 = arith.addf %124, %126 : vector<8x1xf32>
      %128 = vector.broadcast %120 : vector<8x1xf32> to vector<8x8xf32>
      %129 = arith.mulf %128, %arg23 : vector<8x8xf32>
      %130 = vector.extract_strided_slice %68 {offsets = [0, 16], sizes = [8, 8], strides = [1, 1]} : vector<8x32xf32> to vector<8x8xf32>
      %cst_51 = arith.constant dense<0.000000e+00> : vector<8x8xf32>
      %131 = tpu.matmul %123, %130, %cst_51 {dimension_numbers = #tpu.dot_dimension_numbers<[1], [0], [0], [1], [0, 0, 1, 1], [], []>} : vector<8x8xf32>, vector<8x8xf32>, vector<8x8xf32> -> vector<8x8xf32>
      %132 = arith.addf %129, %131 : vector<8x8xf32>
      %133 = vector.extract_strided_slice %65 {offsets = [0, 24], sizes = [8, 8], strides = [1, 1]} : vector<8x32xf32> to vector<8x8xf32>
      %cst_52 = arith.constant dense<0.000000e+00> : vector<8x8xf32>
      %134 = tpu.matmul %18, %133, %cst_52 {dimension_numbers = #tpu.dot_dimension_numbers<[1], [1], [0], [0], [0, 0, 1, 0], [], []>} : vector<8x8xf32>, vector<8x8xf32>, vector<8x8xf32> -> vector<8x8xf32>
      %135 = arith.addf %134, %24 : vector<8x8xf32>
      %136 = arith.select %69, %135, %134 : vector<8x8xf32>
      %cst_53 = arith.constant dense<0xFF800000> : vector<8xf32>
      %137 = vector.multi_reduction <maximumf>, %136, %cst_53 [1] : vector<8x8xf32> to vector<8xf32>
      %138 = vector.shape_cast %137 : vector<8xf32> to vector<8x1xf32>
      %139 = arith.maximumf %arg24, %138 : vector<8x1xf32>
      %140 = arith.subf %arg24, %139 : vector<8x1xf32>
      %141 = math.exp %140 : vector<8x1xf32>
      %142 = vector.broadcast %139 : vector<8x1xf32> to vector<8x8xf32>
      %143 = arith.subf %136, %142 : vector<8x8xf32>
      %144 = math.exp %143 : vector<8x8xf32>
      %145 = arith.mulf %141, %arg25 : vector<8x1xf32>
      %cst_54 = arith.constant dense<0.000000e+00> : vector<8xf32>
      %146 = vector.multi_reduction <add>, %144, %cst_54 [1] : vector<8x8xf32> to vector<8xf32>
      %147 = vector.shape_cast %146 : vector<8xf32> to vector<8x1xf32>
      %148 = arith.addf %145, %147 : vector<8x1xf32>
      %149 = vector.broadcast %141 : vector<8x1xf32> to vector<8x8xf32>
      %150 = arith.mulf %149, %arg26 : vector<8x8xf32>
      %151 = vector.extract_strided_slice %68 {offsets = [0, 24], sizes = [8, 8], strides = [1, 1]} : vector<8x32xf32> to vector<8x8xf32>
      %cst_55 = arith.constant dense<0.000000e+00> : vector<8x8xf32>
      %152 = tpu.matmul %144, %151, %cst_55 {dimension_numbers = #tpu.dot_dimension_numbers<[1], [0], [0], [1], [0, 0, 1, 1], [], []>} : vector<8x8xf32>, vector<8x8xf32>, vector<8x8xf32> -> vector<8x8xf32>
      %153 = arith.addf %150, %152 : vector<8x8xf32>
      scf.yield %76, %85, %90, %97, %106, %111, %118, %127, %132, %139, %148, %153 : vector<8x1xf32>, vector<8x1xf32>, vector<8x8xf32>, vector<8x1xf32>, vector<8x1xf32>, vector<8x8xf32>, vector<8x1xf32>, vector<8x1xf32>, vector<8x8xf32>, vector<8x1xf32>, vector<8x1xf32>, vector<8x8xf32>
    }
    %41 = tpu.reciprocal %40#1 {approx = true} : vector<8x1xf32> -> vector<8x1xf32>
    %42 = vector.broadcast %41 : vector<8x1xf32> to vector<8x8xf32>
    %43 = arith.mulf %40#2, %42 : vector<8x8xf32>
    %c0_23 = arith.constant 0 : index
    %c0_24 = arith.constant 0 : index
    %44 = vector.load %arg13[%c0_23, %c0_24] : memref<8x32xf32, #tpu.memory_space<vmem>>, vector<8x8xf32>
    tpu.vector_store %arg13[%c0_23, %c0_24], %43 {strides = array<i32>} : memref<8x32xf32, #tpu.memory_space<vmem>>, vector<8x8xf32>,
    %45 = tpu.reciprocal %40#4 {approx = true} : vector<8x1xf32> -> vector<8x1xf32>
    %46 = vector.broadcast %45 : vector<8x1xf32> to vector<8x8xf32>
    %47 = arith.mulf %40#5, %46 : vector<8x8xf32>
    %c0_25 = arith.constant 0 : index
    %c8 = arith.constant 8 : index
    %48 = vector.load %arg13[%c0_25, %c8] : memref<8x32xf32, #tpu.memory_space<vmem>>, vector<8x8xf32>
    tpu.vector_store %arg13[%c0_25, %c8], %47 {strides = array<i32>} : memref<8x32xf32, #tpu.memory_space<vmem>>, vector<8x8xf32>,
    %49 = tpu.reciprocal %40#7 {approx = true} : vector<8x1xf32> -> vector<8x1xf32>
    %50 = vector.broadcast %49 : vector<8x1xf32> to vector<8x8xf32>
    %51 = arith.mulf %40#8, %50 : vector<8x8xf32>
    %c0_26 = arith.constant 0 : index
    %c16 = arith.constant 16 : index
    %52 = vector.load %arg13[%c0_26, %c16] : memref<8x32xf32, #tpu.memory_space<vmem>>, vector<8x8xf32>
    tpu.vector_store %arg13[%c0_26, %c16], %51 {strides = array<i32>} : memref<8x32xf32, #tpu.memory_space<vmem>>, vector<8x8xf32>,
    %53 = tpu.reciprocal %40#10 {approx = true} : vector<8x1xf32> -> vector<8x1xf32>
    %54 = vector.broadcast %53 : vector<8x1xf32> to vector<8x8xf32>
    %55 = arith.mulf %40#11, %54 : vector<8x8xf32>
    %c0_27 = arith.constant 0 : index
    %c24 = arith.constant 24 : index
    %56 = vector.load %arg13[%c0_27, %c24] : memref<8x32xf32, #tpu.memory_space<vmem>>, vector<8x8xf32>
    tpu.vector_store %arg13[%c0_27, %c24], %55 {strides = array<i32>} : memref<8x32xf32, #tpu.memory_space<vmem>>, vector<8x8xf32>,
    %c0_28 = arith.constant 0 : index
    %c0_29 = arith.constant 0 : index
    %57 = vector.load %arg13[%c0_28, %c0_29] : memref<8x32xf32, #tpu.memory_space<vmem>>, vector<8x32xf32>
    %c0_30 = arith.constant 0 : index
    %c0_31 = arith.constant 0 : index
    %58 = vector.load %arg9[%c0_30, %c0_31] : memref<32x32xf32, #tpu.memory_space<vmem>>, vector<32x32xf32>
    %cst_32 = arith.constant dense<0.000000e+00> : vector<8x32xf32>
    %59 = tpu.matmul %57, %58, %cst_32 {dimension_numbers = #tpu.dot_dimension_numbers<[1], [0], [0], [1], [0, 0, 1, 1], [], []>} : vector<8x32xf32>, vector<32x32xf32>, vector<8x32xf32> -> vector<8x32xf32>
    %c0_33 = arith.constant 0 : index
    %c0_34 = arith.constant 0 : index
    %c0_35 = arith.constant 0 : index
    %60 = vector.load %arg10[%c0_33, %c0_34, %c0_35] : memref<1x8x32xf32, #tpu.memory_space<vmem>>, vector<1x8x32xf32>
    %61 = vector.shape_cast %60 : vector<1x8x32xf32> to vector<8x32xf32>
    %62 = vector.shape_cast %59 : vector<8x32xf32> to vector<1x8x32xf32>
    tpu.vector_store %arg10[%c0_33, %c0_34, %c0_35], %62 {strides = array<i32>} : memref<1x8x32xf32, #tpu.memory_space<vmem>>, vector<1x8x32xf32>,
    return
  }
  func.func @transform_0(%arg0: i32, %arg1: i32) -> (i32, i32, i32) {
    %c0_i32 = arith.constant 0 : i32
    %c0_i32_0 = arith.constant 0 : i32
    %c0_i32_1 = arith.constant 0 : i32
    return %arg0, %c0_i32, %c0_i32_0 : i32, i32, i32
  }
  func.func @transform_1(%arg0: i32, %arg1: i32) -> (i32, i32) {
    %c0_i32 = arith.constant 0 : i32
    %c0_i32_0 = arith.constant 0 : i32
    %c0_i32_1 = arith.constant 0 : i32
    return %c0_i32, %c0_i32_0 : i32, i32
  }
  func.func @transform_2(%arg0: i32, %arg1: i32) -> (i32, i32) {
    %c0_i32 = arith.constant 0 : i32
    %c0_i32_0 = arith.constant 0 : i32
    %c0_i32_1 = arith.constant 0 : i32
    return %c0_i32, %c0_i32_0 : i32, i32
  }
  func.func @transform_3(%arg0: i32, %arg1: i32) -> (i32, i32) {
    %c0_i32 = arith.constant 0 : i32
    %c0_i32_0 = arith.constant 0 : i32
    %c0_i32_1 = arith.constant 0 : i32
    return %c0_i32, %c0_i32_0 : i32, i32
  }
  func.func @transform_4(%arg0: i32, %arg1: i32) -> (i32, i32) {
    %c0_i32 = arith.constant 0 : i32
    %c0_i32_0 = arith.constant 0 : i32
    %c0_i32_1 = arith.constant 0 : i32
    return %c0_i32, %c0_i32_0 : i32, i32
  }
  func.func @transform_5(%arg0: i32, %arg1: i32) -> (i32, i32) {
    %c0_i32 = arith.constant 0 : i32
    %c0_i32_0 = arith.constant 0 : i32
    %c0_i32_1 = arith.constant 0 : i32
    return %c0_i32, %c0_i32_0 : i32, i32
  }
  func.func @transform_6(%arg0: i32, %arg1: i32) -> (i32, i32) {
    %c0_i32 = arith.constant 0 : i32
    %c0_i32_0 = arith.constant 0 : i32
    %c0_i32_1 = arith.constant 0 : i32
    return %c0_i32, %c0_i32_0 : i32, i32
  }
  func.func @transform_7(%arg0: i32, %arg1: i32) -> (i32, i32) {
    %c0_i32 = arith.constant 0 : i32
    %c0_i32_0 = arith.constant 0 : i32
    %c0_i32_1 = arith.constant 0 : i32
    return %c0_i32, %c0_i32_0 : i32, i32
  }
  func.func @transform_8(%arg0: i32, %arg1: i32) -> (i32, i32, i32) {
    %c0_i32 = arith.constant 0 : i32
    %c0_i32_0 = arith.constant 0 : i32
    return %arg0, %arg1, %c0_i32 : i32, i32, i32
  }
}

</mosaic_0001>

<llo_original>
// kernel: tpu_custom_call.1
$region0: #{tpu_custom_call.1}
  #allocation0 [shape = 'u32[]', space=smem, size = 0x4, offset = 0x4, fixed_abs, tag = 'smem constant byte address 0x4 - core index']
  #allocation1 [shape = 'u32[72,128]{1,0:T(1,128)}', space=vmem, size = 0x9000, scoped, tag = 'internal scratch']
  #allocation2 [shape = 'f32[1,8,32]{2,1,0:T(8,128)}', space=vmem, size = 0x1000, scoped, tag = 'scratch operand']
  #allocation3 [shape = 'f32[1,8,32]{2,1,0:T(8,128)}', space=vmem, size = 0x1000, scoped, tag = 'scratch operand']
  #allocation4 [shape = 'f32[8,32]{1,0:T(8,128)}', space=vmem, size = 0x1000, scoped, tag = 'scratch operand']
  %s0 = inlined_call_operand.hbm [shape: f32[2,8,32], index: 0, kind: input, shape index: {}]
  %s1 = inlined_call_operand.hbm [shape: f32[32,32], index: 1, kind: input, shape index: {}]
  %s2 = inlined_call_operand.hbm [shape: f32[32,32], index: 2, kind: input, shape index: {}]
  %s3 = inlined_call_operand.hbm [shape: f32[32,32], index: 3, kind: input, shape index: {}]
  %s4 = inlined_call_operand.vmem [shape: f32[1,32], index: 4, kind: input, shape index: {}]
  %s5 = inlined_call_operand.vmem [shape: f32[1,32], index: 5, kind: input, shape index: {}]
  %s6 = inlined_call_operand.vmem [shape: f32[1,32], index: 6, kind: input, shape index: {}]
  %s7 = inlined_call_operand.hbm [shape: f32[32,32], index: 7, kind: input, shape index: {}]
  %s8 = inlined_call_operand.hbm [shape: f32[2,8,32], index: 8, kind: output, shape index: {}]
  %s9 = sld [smem:[#allocation0]]
  $region96: #{tpu_custom_call.1} parent=0
    _
  %s11 = ssub.s32 1, %s9
  %s12 = scalar_select 0, %s11, %s9
  $region1: #{tpu_custom_call.1} parent=0
    #allocation5 [shape = 'u8[8192]{0}', space=vmem, size = 0x2000, scoped, tag = 'input window, operand 0']
    #allocation6 [shape = 's32[2]{0}', space=sflag, size = 0x8, scoped, tag = 'scoped memory for tpu_custom_call.1']
    #allocation7 [shape = 's32[2]{0}', space=sflag, size = 0x8, scoped, tag = 'scoped memory for tpu_custom_call.1']
    #allocation8 [shape = 'u8[16384]{0}', space=vmem, size = 0x4000, scoped, tag = 'input window, operand 1, single buffered']
    #allocation9 [shape = 's32[1]{0}', space=sflag, size = 0x4, scoped, tag = 'scoped memory for tpu_custom_call.1']
    #allocation10 [shape = 'u8[16384]{0}', space=vmem, size = 0x4000, scoped, tag = 'input window, operand 2, single buffered']
    #allocation11 [shape = 'u8[16384]{0}', space=vmem, size = 0x4000, scoped, tag = 'input window, operand 3, single buffered']
    #allocation12 [shape = 's32[1]{0}', space=sflag, size = 0x4, scoped, tag = 'scoped memory for tpu_custom_call.1']
    #allocation13 [shape = 'u8[16384]{0}', space=vmem, size = 0x4000, scoped, tag = 'input window, operand 7, single buffered']
    #allocation14 [shape = 'u8[8192]{0}', space=vmem, size = 0x2000, scoped, tag = 'output window, operand 0']
    %13 = vsyncpa [#allocation6], 0
    %s14 = scalar_lea.sflag [#allocation6], 1
    %15 = vsyncpa %s14, 0
    %16 = vsyncpa [#allocation9], 0
    %17 = vsyncpa [#allocation12], 0
    %18 = vsyncpa [#allocation7], 0
    %s19 = scalar_lea.sflag [#allocation7], 1
    %20 = vsyncpa %s19, 0
    loop: start=0, step=1, limit=4
    $region2: #{tpu_custom_call.1} parent=1 // loop_pre_header
      _
    $region3: #{tpu_custom_call.1} parent=1 // loop_header
      %s22 = sphi 0, %s26
      %p23 = scmp.ge.s32.totalorder %s22, 4
      %s29 = sphi 0, %s41
      %s30 = sphi 0, %s37
      %s31 = sphi 0, %s29
      %s32 = sphi 0, %s30
      %s33 = sphi 0, %s31
      %s34 = sphi 0, %s32
      %s44 = sphi 0, %s46
      %s47 = sphi 0, %s44
      %s48 = sphi 0, %s47
      %s64 = sphi 0, %s48
      %s68 = sphi 0, %s68
      %s70 = sphi 0, %s68
      %s71 = sphi 0, %s70
      %s85 = sphi 0, %s71
      %s89 = sphi 0, %s89
      %s91 = sphi 0, %s89
      %s92 = sphi 0, %s91
      %s106 = sphi 0, %s92
      %s110 = sphi 0, %s110
      %s112 = sphi 0, %s110
      %s113 = sphi 0, %s112
      %s127 = sphi 0, %s113
      %s131 = sphi 0, %s131
      %s133 = sphi 0, %s131
      %s134 = sphi 0, %s133
      %s148 = sphi 0, %s134
      %s152 = sphi 0, %s152
      %s154 = sphi 0, %s152
      %s155 = sphi 0, %s154
      %s169 = sphi 0, %s155
      %s173 = sphi 0, %s173
      %s175 = sphi 0, %s173
      %s176 = sphi 0, %s175
      %s190 = sphi 0, %s176
      %s194 = sphi 0, %s194
      %s196 = sphi 0, %s194
      %s197 = sphi 0, %s196
      %s211 = sphi 0, %s197
      %s219 = sphi 0, %s221
      %s222 = sphi 0, %s219
      %s223 = sphi 0, %s222
      %s239 = sphi 0, %s223
    $region4: #{tpu_custom_call.1} parent=1 // loop_header_branch
      %25 = sbr.rel (%p23) target = $region8
    $region5: #{tpu_custom_call.1} parent=1 // loop_body
      %s27 = ssub.s32 %s22, 1
      %s28 = ssub.s32 %s22, 2
      %s35 = sadd.s32 1, %s30
      %p36 = scmp.ge.s32.totalorder %s35, 1
      %s37 = scalar_select %p36, 0, %s35
      %s38 = sadd.s32 1, %s29
      %s39 = scalar_select %p36, %s38, %s29
      %p40 = scmp.ge.s32.totalorder %s39, 2
      %s41 = scalar_select %p40, 0, %s39
      %s42 = ssub.s32 %s29, %s41
      %p43 = scmp.eq.s32.totalorder %s42, 0
      %s45 = sadd.s32 %s44, 1
      %s46 = scalar_select %p43, %s44, %s45
      %p49 = pneg %p43
      %p50 = scmp.eq.s32.totalorder %s22, 1
      %p51 = por %p49, %p50
      %p52 = scmp.ne.s32.totalorder %s44, %s47
      %p53 = scmp.eq.s32.totalorder %s22, 0
      %p54 = por %p52, %p53
      %p55 = scmp.ne.s32.totalorder %s44, %s47
      %p56 = scmp.eq.s32.totalorder %s27, 1
      %p57 = por %p55, %p56
      %p58 = scmp.ne.s32.totalorder %s47, %s48
      %p59 = scmp.eq.s32.totalorder %s27, 0
      %p60 = por %p58, %p59
      %p61 = scmp.ne.s32.totalorder %s47, %s48
      %p62 = scmp.eq.s32.totalorder %s28, 1
      %p63 = por %p61, %p62
      %p65 = scmp.ne.s32.totalorder %s48, %s64
      %p66 = scmp.eq.s32.totalorder %s28, 0
      %p67 = por %p65, %p66
      %s69 = sadd.s32 %s68, 1
      %p72 = scmp.eq.s32.totalorder %s22, 1
      %p73 = scmp.ne.s32.totalorder %s68, %s70
      %p74 = scmp.eq.s32.totalorder %s22, 0
      %p75 = por %p73, %p74
      %p76 = scmp.ne.s32.totalorder %s68, %s70
      %p77 = scmp.eq.s32.totalorder %s27, 1
      %p78 = por %p76, %p77
      %p79 = scmp.ne.s32.totalorder %s70, %s71
      %p80 = scmp.eq.s32.totalorder %s27, 0
      %p81 = por %p79, %p80
      %p82 = scmp.ne.s32.totalorder %s70, %s71
      %p83 = scmp.eq.s32.totalorder %s28, 1
      %p84 = por %p82, %p83
      %p86 = scmp.ne.s32.totalorder %s71, %s85
      %p87 = scmp.eq.s32.totalorder %s28, 0
      %p88 = por %p86, %p87
      %s90 = sadd.s32 %s89, 1
      %p93 = scmp.eq.s32.totalorder %s22, 1
      %p94 = scmp.ne.s32.totalorder %s89, %s91
      %p95 = scmp.eq.s32.totalorder %s22, 0
      %p96 = por %p94, %p95
      %p97 = scmp.ne.s32.totalorder %s89, %s91
      %p98 = scmp.eq.s32.totalorder %s27, 1
      %p99 = por %p97, %p98
      %p100 = scmp.ne.s32.totalorder %s91, %s92
      %p101 = scmp.eq.s32.totalorder %s27, 0
      %p102 = por %p100, %p101
      %p103 = scmp.ne.s32.totalorder %s91, %s92
      %p104 = scmp.eq.s32.totalorder %s28, 1
      %p105 = por %p103, %p104
      %p107 = scmp.ne.s32.totalorder %s92, %s106
      %p108 = scmp.eq.s32.totalorder %s28, 0
      %p109 = por %p107, %p108
      %s111 = sadd.s32 %s110, 1
      %p114 = scmp.eq.s32.totalorder %s22, 1
      %p115 = scmp.ne.s32.totalorder %s110, %s112
      %p116 = scmp.eq.s32.totalorder %s22, 0
      %p117 = por %p115, %p116
      %p118 = scmp.ne.s32.totalorder %s110, %s112
      %p119 = scmp.eq.s32.totalorder %s27, 1
      %p120 = por %p118, %p119
      %p121 = scmp.ne.s32.totalorder %s112, %s113
      %p122 = scmp.eq.s32.totalorder %s27, 0
      %p123 = por %p121, %p122
      %p124 = scmp.ne.s32.totalorder %s112, %s113
      %p125 = scmp.eq.s32.totalorder %s28, 1
      %p126 = por %p124, %p125
      %p128 = scmp.ne.s32.totalorder %s113, %s127
      %p129 = scmp.eq.s32.totalorder %s28, 0
      %p130 = por %p128, %p129
      %s132 = sadd.s32 %s131, 1
      %p135 = scmp.eq.s32.totalorder %s22, 1
      %p136 = scmp.ne.s32.totalorder %s131, %s133
      %p137 = scmp.eq.s32.totalorder %s22, 0
      %p138 = por %p136, %p137
      %p139 = scmp.ne.s32.totalorder %s131, %s133
      %p140 = scmp.eq.s32.totalorder %s27, 1
      %p141 = por %p139, %p140
      %p142 = scmp.ne.s32.totalorder %s133, %s134
      %p143 = scmp.eq.s32.totalorder %s27, 0
      %p144 = por %p142, %p143
      %p145 = scmp.ne.s32.totalorder %s133, %s134
      %p146 = scmp.eq.s32.totalorder %s28, 1
      %p147 = por %p145, %p146
      %p149 = scmp.ne.s32.totalorder %s134, %s148
      %p150 = scmp.eq.s32.totalorder %s28, 0
      %p151 = por %p149, %p150
      %s153 = sadd.s32 %s152, 1
      %p156 = scmp.eq.s32.totalorder %s22, 1
      %p157 = scmp.ne.s32.totalorder %s152, %s154
      %p158 = scmp.eq.s32.totalorder %s22, 0
      %p159 = por %p157, %p158
      %p160 = scmp.ne.s32.totalorder %s152, %s154
      %p161 = scmp.eq.s32.totalorder %s27, 1
      %p162 = por %p160, %p161
      %p163 = scmp.ne.s32.totalorder %s154, %s155
      %p164 = scmp.eq.s32.totalorder %s27, 0
      %p165 = por %p163, %p164
      %p166 = scmp.ne.s32.totalorder %s154, %s155
      %p167 = scmp.eq.s32.totalorder %s28, 1
      %p168 = por %p166, %p167
      %p170 = scmp.ne.s32.totalorder %s155, %s169
      %p171 = scmp.eq.s32.totalorder %s28, 0
      %p172 = por %p170, %p171
      %s174 = sadd.s32 %s173, 1
      %p177 = scmp.eq.s32.totalorder %s22, 1
      %p178 = scmp.ne.s32.totalorder %s173, %s175
      %p179 = scmp.eq.s32.totalorder %s22, 0
      %p180 = por %p178, %p179
      %p181 = scmp.ne.s32.totalorder %s173, %s175
      %p182 = scmp.eq.s32.totalorder %s27, 1
      %p183 = por %p181, %p182
      %p184 = scmp.ne.s32.totalorder %s175, %s176
      %p185 = scmp.eq.s32.totalorder %s27, 0
      %p186 = por %p184, %p185
      %p187 = scmp.ne.s32.totalorder %s175, %s176
      %p188 = scmp.eq.s32.totalorder %s28, 1
      %p189 = por %p187, %p188
      %p191 = scmp.ne.s32.totalorder %s176, %s190
      %p192 = scmp.eq.s32.totalorder %s28, 0
      %p193 = por %p191, %p192
      %s195 = sadd.s32 %s194, 1
      %p198 = scmp.eq.s32.totalorder %s22, 1
      %p199 = scmp.ne.s32.totalorder %s194, %s196
      %p200 = scmp.eq.s32.totalorder %s22, 0
      %p201 = por %p199, %p200
      %p202 = scmp.ne.s32.totalorder %s194, %s196
      %p203 = scmp.eq.s32.totalorder %s27, 1
      %p204 = por %p202, %p203
      %p205 = scmp.ne.s32.totalorder %s196, %s197
      %p206 = scmp.eq.s32.totalorder %s27, 0
      %p207 = por %p205, %p206
      %p208 = scmp.ne.s32.totalorder %s196, %s197
      %p209 = scmp.eq.s32.totalorder %s28, 1
      %p210 = por %p208, %p209
      %p212 = scmp.ne.s32.totalorder %s197, %s211
      %p213 = scmp.eq.s32.totalorder %s28, 0
      %p214 = por %p212, %p213
      %s215 = ssub.s32 %s29, %s41
      %s216 = ssub.s32 %s30, %s37
      %s217 = sor.u32 %s215, %s216
      %p218 = scmp.eq.s32.totalorder %s217, 0
      %s220 = sadd.s32 %s219, 1
      %s221 = scalar_select %p218, %s219, %s220
      %p224 = pneg %p218
      %p225 = scmp.eq.s32.totalorder %s22, 1
      %p226 = por %p224, %p225
      %p227 = scmp.ne.s32.totalorder %s219, %s222
      %p228 = scmp.eq.s32.totalorder %s22, 0
      %p229 = por %p227, %p228
      %p230 = scmp.ne.s32.totalorder %s219, %s222
      %p231 = scmp.eq.s32.totalorder %s27, 1
      %p232 = por %p230, %p231
      %p233 = scmp.ne.s32.totalorder %s222, %s223
      %p234 = scmp.eq.s32.totalorder %s27, 0
      %p235 = por %p233, %p234
      %p236 = scmp.ne.s32.totalorder %s222, %s223
      %p237 = scmp.eq.s32.totalorder %s28, 1
      %p238 = por %p236, %p237
      %p240 = scmp.ne.s32.totalorder %s223, %s239
      %p241 = scmp.eq.s32.totalorder %s28, 0
      %p242 = por %p240, %p241
      %p243 = scmp.le.s32.totalorder 1, %s22
      %p244 = scmp.lt.s32.totalorder %s22, 3
      %p245 = pnand %p243, %p244
      %p246 = pneg %p245
      // Predicated region
      $region9: #{tpu_custom_call.1} parent=5 // pred_check
        _
      $region10: #{tpu_custom_call.1} parent=5 // pred_check_branch
        %248 = sbr.rel (%p245) target = $region12
      $region11: #{tpu_custom_call.1} parent=5 // pred_region
        %s249 = ssub.s32 %s22, 1
        // Predicated region
        $region13: #{tpu_custom_call.1} parent=11 // pred_check
          %p250 = pneg %p81
        $region14: #{tpu_custom_call.1} parent=11 // pred_check_branch
          %252 = sbr.rel (%p250) target = $region16
        $region15: #{tpu_custom_call.1} parent=11 // pred_region
          %254 = vsyncadd [#allocation9], 0
          %s255 = sshll.u32 %s1, 4
          %s256 = int_to_ptr.hbm [resolvable:$true] %s255
          %s257 = sshll.u32 [#allocation8], 4
          %s258 = int_to_ptr.vmem [resolvable:$true] %s257
          %263 = dma.hbm_to_vmem [thread:$0]  %s256, 512, %s258, [#allocation9], 128, 128, 8
        $region16: #{tpu_custom_call.1} parent=11 // pred_fallthru
          _
        // Predicated region
        $region17: #{tpu_custom_call.1} parent=11 // pred_check
          %p264 = pneg %p102
        $region18: #{tpu_custom_call.1} parent=11 // pred_check_branch
          %266 = sbr.rel (%p264) target = $region20
        $region19: #{tpu_custom_call.1} parent=11 // pred_region
          %268 = vsyncadd [#allocation9], 0
          %s269 = sshll.u32 %s2, 4
          %s270 = int_to_ptr.hbm [resolvable:$true] %s269
          %s271 = sshll.u32 [#allocation10], 4
          %s272 = int_to_ptr.vmem [resolvable:$true] %s271
          %277 = dma.hbm_to_vmem [thread:$0]  %s270, 512, %s272, [#allocation9], 128, 128, 8
        $region20: #{tpu_custom_call.1} parent=11 // pred_fallthru
          _
        // Predicated region
        $region21: #{tpu_custom_call.1} parent=11 // pred_check
          %p278 = pneg %p123
        $region22: #{tpu_custom_call.1} parent=11 // pred_check_branch
          %280 = sbr.rel (%p278) target = $region24
        $region23: #{tpu_custom_call.1} parent=11 // pred_region
          %282 = vsyncadd [#allocation12], 0
          %s283 = sshll.u32 %s3, 4
          %s284 = int_to_ptr.hbm [resolvable:$true] %s283
          %s285 = sshll.u32 [#allocation11], 4
          %s286 = int_to_ptr.vmem [resolvable:$true] %s285
          %291 = dma.hbm_to_vmem [thread:$0]  %s284, 512, %s286, [#allocation12], 128, 128, 8
        $region24: #{tpu_custom_call.1} parent=11 // pred_fallthru
          _
        // Predicated region
        $region25: #{tpu_custom_call.1} parent=11 // pred_check
          %p292 = pneg %p144
        $region26: #{tpu_custom_call.1} parent=11 // pred_check_branch
          %294 = sbr.rel (%p292) target = $region28
        $region27: #{tpu_custom_call.1} parent=11 // pred_region
          _
        $region28: #{tpu_custom_call.1} parent=11 // pred_fallthru
          _
        // Predicated region
        $region29: #{tpu_custom_call.1} parent=11 // pred_check
          %p295 = pneg %p165
        $region30: #{tpu_custom_call.1} parent=11 // pred_check_branch
          %297 = sbr.rel (%p295) target = $region32
        $region31: #{tpu_custom_call.1} parent=11 // pred_region
          _
        $region32: #{tpu_custom_call.1} parent=11 // pred_fallthru
          _
        // Predicated region
        $region33: #{tpu_custom_call.1} parent=11 // pred_check
          %p298 = pneg %p186
        $region34: #{tpu_custom_call.1} parent=11 // pred_check_branch
          %300 = sbr.rel (%p298) target = $region36
        $region35: #{tpu_custom_call.1} parent=11 // pred_region
          _
        $region36: #{tpu_custom_call.1} parent=11 // pred_fallthru
          _
        // Predicated region
        $region37: #{tpu_custom_call.1} parent=11 // pred_check
          %p301 = pneg %p207
        $region38: #{tpu_custom_call.1} parent=11 // pred_check_branch
          %303 = sbr.rel (%p301) target = $region40
        $region39: #{tpu_custom_call.1} parent=11 // pred_region
          %305 = vsyncadd [#allocation12], 0
          %s306 = sshll.u32 %s7, 4
          %s307 = int_to_ptr.hbm [resolvable:$true] %s306
          %s308 = sshll.u32 [#allocation13], 4
          %s309 = int_to_ptr.vmem [resolvable:$true] %s308
          %314 = dma.hbm_to_vmem [thread:$0]  %s307, 512, %s309, [#allocation12], 128, 128, 8
        $region40: #{tpu_custom_call.1} parent=11 // pred_fallthru
          _
      $region12: #{tpu_custom_call.1} parent=5 // pred_fallthru
        _
      %p315 = scmp.lt.s32.totalorder %s22, 2
      // Predicated region
      $region41: #{tpu_custom_call.1} parent=5 // pred_check
        %p316 = pneg %p315
      $region42: #{tpu_custom_call.1} parent=5 // pred_check_branch
        %318 = sbr.rel (%p316) target = $region44
      $region43: #{tpu_custom_call.1} parent=5 // pred_region
        // Predicated region
        $region45: #{tpu_custom_call.1} parent=43 // pred_check
          %p319 = pneg %p54
        $region46: #{tpu_custom_call.1} parent=43 // pred_check_branch
          %321 = sbr.rel (%p319) target = $region48
        $region47: #{tpu_custom_call.1} parent=43 // pred_region
          %s322 = sand.u32 %s44, 1
          %s323 = scalar_lea.sflag [#allocation6], %s322
          %s324 = sand.u32 %s44, 1
          %s325 = smul.addr %s324, 8
          %s326 = scalar_lea.vmem [#allocation5], %s325
          %328 = vsyncadd %s323, 0
          %s329 = smul.addr %s29, 8
          %s330 = scalar_lea.hbm %s0, %s329
          %s332 = sshll.u32 %s330, 4
          %s333 = int_to_ptr.hbm [resolvable:$true] %s332
          %s334 = sshll.u32 %s326, 4
          %s335 = int_to_ptr.vmem [resolvable:$true] %s334
          %337 = dma.hbm_to_vmem [thread:$0]  %s333, 128, %s335, %s323
        $region48: #{tpu_custom_call.1} parent=43 // pred_fallthru
          _
      $region44: #{tpu_custom_call.1} parent=5 // pred_fallthru
        _
      %p338 = scmp.le.s32.totalorder 1, %s22
      %p339 = scmp.lt.s32.totalorder %s22, 3
      %p340 = pnand %p338, %p339
      %p341 = pneg %p340
      // Predicated region
      $region49: #{tpu_custom_call.1} parent=5 // pred_check
        _
      $region50: #{tpu_custom_call.1} parent=5 // pred_check_branch
        %343 = sbr.rel (%p340) target = $region52
      $region51: #{tpu_custom_call.1} parent=5 // pred_region
        %s344 = ssub.s32 %s22, 1
        %s345 = sand.u32 %s47, 1
        %s346 = scalar_lea.sflag [#allocation6], %s345
        %s347 = sand.u32 %s47, 1
        %s348 = smul.addr %s347, 8
        %s349 = scalar_lea.vmem [#allocation5], %s348
        // Predicated region
        $region53: #{tpu_custom_call.1} parent=51 // pred_check
          %p350 = pneg %p60
        $region54: #{tpu_custom_call.1} parent=51 // pred_check_branch
          %352 = sbr.rel (%p350) target = $region56
        $region55: #{tpu_custom_call.1} parent=51 // pred_region
          %354 = dma.done %s346, 128
        $region56: #{tpu_custom_call.1} parent=51 // pred_fallthru
          _
        // Predicated region
        $region57: #{tpu_custom_call.1} parent=51 // pred_check
          %p355 = pneg %p81
        $region58: #{tpu_custom_call.1} parent=51 // pred_check_branch
          %357 = sbr.rel (%p355) target = $region60
        $region59: #{tpu_custom_call.1} parent=51 // pred_region
          %359 = dma.done [#allocation9], 512
        $region60: #{tpu_custom_call.1} parent=51 // pred_fallthru
          _
        // Predicated region
        $region61: #{tpu_custom_call.1} parent=51 // pred_check
          %p360 = pneg %p102
        $region62: #{tpu_custom_call.1} parent=51 // pred_check_branch
          %362 = sbr.rel (%p360) target = $region64
        $region63: #{tpu_custom_call.1} parent=51 // pred_region
          %364 = dma.done [#allocation9], 512
        $region64: #{tpu_custom_call.1} parent=51 // pred_fallthru
          _
        // Predicated region
        $region65: #{tpu_custom_call.1} parent=51 // pred_check
          %p365 = pneg %p123
        $region66: #{tpu_custom_call.1} parent=51 // pred_check_branch
          %367 = sbr.rel (%p365) target = $region68
        $region67: #{tpu_custom_call.1} parent=51 // pred_region
          %369 = dma.done [#allocation12], 512
        $region68: #{tpu_custom_call.1} parent=51 // pred_fallthru
          _
        // Predicated region
        $region69: #{tpu_custom_call.1} parent=51 // pred_check
          %p370 = pneg %p207
        $region70: #{tpu_custom_call.1} parent=51 // pred_check_branch
          %372 = sbr.rel (%p370) target = $region72
        $region71: #{tpu_custom_call.1} parent=51 // pred_region
          %374 = dma.done [#allocation12], 512
        $region72: #{tpu_custom_call.1} parent=51 // pred_fallthru
          _
        %s375 = sand.u32 %s47, 1
        %s376 = scalar_lea.sflag [#allocation6], %s375
        %s377 = sand.u32 %s47, 1
        %s378 = smul.addr %s377, 8
        %s379 = scalar_lea.vmem [#allocation5], %s378
        %p380 = pneg %p60
        %p381 = pneg %p57
        %p382 = pneg %p81
        %p383 = pneg %p78
        %p384 = pneg %p102
        %p385 = pneg %p99
        %p386 = pneg %p123
        %p387 = pneg %p120
        %p388 = pneg %p144
        %p389 = pneg %p141
        %p390 = pneg %p165
        %p391 = pneg %p162
        %p392 = pneg %p186
        %p393 = pneg %p183
        %p394 = pneg %p207
        %p395 = pneg %p204
        %p396 = pneg %p235
        %p397 = pneg %p232
        %s398 = sand.u32 %s222, 1
        %s399 = scalar_lea.sflag [#allocation7], %s398
        %s400 = sand.u32 %s222, 1
        %s401 = smul.addr %s400, 8
        %s402 = scalar_lea.vmem [#allocation14], %s401
        %p403 = scmp.eq.s32.totalorder %s32, 0
        // Predicated region
        $region73: #{tpu_custom_call.1} parent=51 // pred_check
          %p404 = pneg %p403
        $region74: #{tpu_custom_call.1} parent=51 // pred_check_branch
          %406 = sbr.rel (%p404) target = $region76
        $region75: #{tpu_custom_call.1} parent=51 // pred_region
          %v407 = vld [vmem:[%s349] sm:$0xff]
          %v408 = vld [vmem:[#allocation10] sm:$0xff]
          %v409 = vld [vmem:[#allocation10 + $0x8] sm:$0xff]
          %v410 = vld [vmem:[#allocation10 + $0x10] sm:$0xff]
          %v411 = vld [vmem:[#allocation10 + $0x18] sm:$0xff]
          %v412 = vld [vmem:[%s5] sm:$0x1]
          %v414 = vperm.slane %v412, 0
          %vm416 = vcmask 261120
          %v418 = vsel %vm416, %v407, 0
          %420 = vmatpush.msra.mxu0 0.0
          %421 = vmatpush.msra.mxu0 0.0
          %422 = vmatpush.msra.mxu0 0.0
          %423 = vmatpush.msra.mxu0 0.0
          %424 = vmatpush.msra.mxu0 0.0
          %425 = vmatpush.msra.mxu0 0.0
          %426 = vmatpush.msra.mxu0 0.0
          %427 = vmatpush.msra.mxu0 0.0
          %428 = vmatpush.msra.mxu0 0.0
          %429 = vmatpush.msra.mxu0 0.0
          %430 = vmatpush.msra.mxu0 0.0
          %431 = vmatpush.msra.mxu0 0.0
          %432 = vmatpush.msra.mxu0 %v411
          %433 = vmatpush.msra.mxu0 %v410
          %434 = vmatpush.msra.mxu0 %v409
          %435 = vmatpush.msra.mxu0 %v408
          %436 = vmatmul.f32.gmra.mxu0 %v418
          %v437 = vpop.f32.mrf.mxu0
          %v438 = vadd.f32 %v414, %v437
          %439 = vdwg.mxu0
          %v440 = vld [vmem:[#allocation11] sm:$0xff]
          %v441 = vld [vmem:[#allocation11 + $0x8] sm:$0xff]
          %v442 = vld [vmem:[#allocation11 + $0x10] sm:$0xff]
          %v443 = vld [vmem:[#allocation11 + $0x18] sm:$0xff]
          %v444 = vld [vmem:[%s6] sm:$0x1]
          %v446 = vperm.slane %v444, 0
          %448 = vmatpush.msra.mxu0 0.0
          %449 = vmatpush.msra.mxu0 0.0
          %450 = vmatpush.msra.mxu0 0.0
          %451 = vmatpush.msra.mxu0 0.0
          %452 = vmatpush.msra.mxu0 0.0
          %453 = vmatpush.msra.mxu0 0.0
          %454 = vmatpush.msra.mxu0 0.0
          %455 = vmatpush.msra.mxu0 0.0
          %456 = vmatpush.msra.mxu0 0.0
          %457 = vmatpush.msra.mxu0 0.0
          %458 = vmatpush.msra.mxu0 0.0
          %459 = vmatpush.msra.mxu0 0.0
          %460 = vmatpush.msra.mxu0 %v443
          %461 = vmatpush.msra.mxu0 %v442
          %462 = vmatpush.msra.mxu0 %v441
          %463 = vmatpush.msra.mxu0 %v440
          %464 = vmatmul.f32.gmra.mxu0 %v418
          %v465 = vpop.f32.mrf.mxu0
          %v466 = vadd.f32 %v446, %v465
          %467 = vdwg.mxu0
          %468 = vst.msk [vmem:[#allocation2] sm:$0xff] %vm416, %v438
          %469 = vst.msk [vmem:[#allocation3] sm:$0xff] %vm416, %v466
        $region76: #{tpu_custom_call.1} parent=51 // pred_fallthru
          _
        %s470 = smul.u32 %s32, 8
        %s471 = scalar_lea.vmem %s349, %s470 [#allocation5]
        %v472 = vld [vmem:[%s471] sm:$0xff]
        %v473 = vld [vmem:[#allocation8] sm:$0xff]
        %v474 = vld [vmem:[#allocation8 + $0x8] sm:$0xff]
        %v475 = vld [vmem:[#allocation8 + $0x10] sm:$0xff]
        %v476 = vld [vmem:[#allocation8 + $0x18] sm:$0xff]
        %v477 = vld [vmem:[%s4] sm:$0x1]
        %v479 = vperm.slane %v477, 0
        %vm481 = vcmask 261120
        %v483 = vsel %vm481, %v472, 0
        %485 = vmatpush.msra.mxu0 0.0
        %486 = vmatpush.msra.mxu0 0.0
        %487 = vmatpush.msra.mxu0 0.0
        %488 = vmatpush.msra.mxu0 0.0
        %489 = vmatpush.msra.mxu0 0.0
        %490 = vmatpush.msra.mxu0 0.0
        %491 = vmatpush.msra.mxu0 0.0
        %492 = vmatpush.msra.mxu0 0.0
        %493 = vmatpush.msra.mxu0 0.0
        %494 = vmatpush.msra.mxu0 0.0
        %495 = vmatpush.msra.mxu0 0.0
        %496 = vmatpush.msra.mxu0 0.0
        %497 = vmatpush.msra.mxu0 %v476
        %498 = vmatpush.msra.mxu0 %v475
        %499 = vmatpush.msra.mxu0 %v474
        %500 = vmatpush.msra.mxu0 %v473
        %501 = vmatmul.f32.gmra.mxu0 %v483
        %v502 = vpop.f32.mrf.mxu0
        %v503 = vadd.f32 %v479, %v502
        %504 = vdwg.mxu0
        %v505 = vmul.f32 %v503, 0.17677669
        %v506 = vlaneseq
        %v507 = vshrl.u32 %v506, 7
        %v508 = vlaneseq
        %v509 = vand.u32 %v508, 127
        %vm510 = vcmp.ge.s32.totalorder %v507, %v509
        %v511 = vsel %vm510, 0.0, -1e+30
        %s512 = sadd.s32 %s32, 1
        // While loop
        $region77: #{tpu_custom_call.1} parent=51 // loop_pre_header
          _
        $region78: #{tpu_custom_call.1} parent=51 // loop_header
          %s514 = sphi 0, %s516
          %p515 = scmp.ge.s32.totalorder %s514, %s512
          %v519 = vphi -1e+30, %v572
          %v520 = vphi 0.0, %v583
          %v521 = vphi 0.0, %v608
          %v522 = vphi -1e+30, %v642
          %v523 = vphi 0.0, %v653
          %v524 = vphi 0.0, %v682
          %v525 = vphi -1e+30, %v716
          %v526 = vphi 0.0, %v727
          %v527 = vphi 0.0, %v755
          %v528 = vphi -1e+30, %v789
          %v529 = vphi 0.0, %v800
          %v530 = vphi 0.0, %v828
        $region79: #{tpu_custom_call.1} parent=51 // loop_header_branch
          %518 = sbr.rel (%p515) target = $region83
        $region80: #{tpu_custom_call.1} parent=51 // loop_body
          %s531 = smul.u32 %s514, 8
          %s532 = scalar_lea.vmem [#allocation2], %s531
          %v533 = vld [vmem:[%s532] sm:$0xff]
          %s534 = scalar_lea.vmem [#allocation3], %s531
          %v535 = vld [vmem:[%s534] sm:$0xff]
          %p536 = scmp.eq.s32.totalorder %s514, %s32
          %vm537 = vcmask 64512
          %v539 = vsel %vm537, %v505, 0
          %v542 = vsel %vm537, %v533, 0
          %544 = vmatpush.xpose.msra.mxu0 0.0
          %545 = vmatpush.xpose.msra.mxu0 0.0
          %546 = vmatpush.xpose.msra.mxu0 0.0
          %547 = vmatpush.xpose.msra.mxu0 0.0
          %548 = vmatpush.xpose.msra.mxu0 0.0
          %549 = vmatpush.xpose.msra.mxu0 0.0
          %550 = vmatpush.xpose.msra.mxu0 0.0
          %551 = vmatpush.xpose.msra.mxu0 0.0
          %552 = vmatpush.xpose.msra.mxu0 0.0
          %553 = vmatpush.xpose.msra.mxu0 0.0
          %554 = vmatpush.xpose.msra.mxu0 0.0
          %555 = vmatpush.xpose.msra.mxu0 0.0
          %556 = vmatpush.xpose.msra.mxu0 0.0
          %557 = vmatpush.xpose.msra.mxu0 0.0
          %558 = vmatpush.xpose.msra.mxu0 0.0
          %559 = vmatpush.xpose.msra.mxu0 %v542
          %560 = vmatmul.f32.gmra.mxu0 %v539
          %v561 = vpop.f32.mrf.mxu0
          %v562 = vadd.f32 0.0, %v561
          %563 = vdwg.mxu0
          %v564 = vadd.f32 %v562, %v511
          %s565 = scalar_select %p536, 1, 0
          %v566 = vstv %s565
          %vm567 = vcmp.eq.s32.totalorder %v566, 1
          %v568 = vsel %vm567, %v564, %v562
          %v569 = vsel %vm537, %v568, -inf
          %570 = vmax.xlane.f32.xlu0 %v569
          %v571 = vpop.xlane.xlu0 %570
          %v572 = vmax.f32 %v519, %v571
          %v573 = vsub.f32 %v519, %v572
          %v574 = vmul.f32 %v573, 1.442695
          %v575 = vpow.pop %v574
          %v576 = vsub.f32 %v568, %v572
          %v577 = vmul.f32 %v576, 1.442695
          %v578 = vpow.pop %v577
          %v579 = vmul.f32 %v575, %v520
          %v580 = vsel %vm537, %v578, 0.0
          %581 = vadd.xlane.f32.xlu0 %v580
          %v582 = vpop.xlane.xlu0 %581
          %v583 = vadd.f32 %v579, %v582
          %v584 = vmul.f32 %v575, %v521
          %v586 = vsel %vm537, %v578, 0
          %588 = vmatpush.msra.mxu0 0.0
          %589 = vmatpush.msra.mxu0 0.0
          %590 = vmatpush.msra.mxu0 0.0
          %591 = vmatpush.msra.mxu0 0.0
          %592 = vmatpush.msra.mxu0 0.0
          %593 = vmatpush.msra.mxu0 0.0
          %594 = vmatpush.msra.mxu0 0.0
          %595 = vmatpush.msra.mxu0 0.0
          %596 = vmatpush.msra.mxu0 0.0
          %597 = vmatpush.msra.mxu0 0.0
          %598 = vmatpush.msra.mxu0 0.0
          %599 = vmatpush.msra.mxu0 0.0
          %600 = vmatpush.msra.mxu0 0.0
          %601 = vmatpush.msra.mxu0 0.0
          %602 = vmatpush.msra.mxu0 0.0
          %603 = vmatpush.msra.mxu0 %v535
          %604 = vmatmul.f32.gmra.mxu0 %v586
          %v605 = vpop.f32.mrf.mxu0
          %v606 = vadd.f32 0.0, %v605
          %607 = vdwg.mxu0
          %v608 = vadd.f32 %v584, %v606
          %609 = vrot.lane.b32.xlu0 %v505, 120
          %v610 = vpop.permute.xlu0 %609
          %611 = vrot.lane.b32.xlu0 %v533, 120
          %v612 = vpop.permute.xlu0 %611
          %v613 = vsel %vm537, %v610, 0
          %v615 = vsel %vm537, %v612, 0
          %617 = vmatpush.xpose.msra.mxu0 0.0
          %618 = vmatpush.xpose.msra.mxu0 0.0
          %619 = vmatpush.xpose.msra.mxu0 0.0
          %620 = vmatpush.xpose.msra.mxu0 0.0
          %621 = vmatpush.xpose.msra.mxu0 0.0
          %622 = vmatpush.xpose.msra.mxu0 0.0
          %623 = vmatpush.xpose.msra.mxu0 0.0
          %624 = vmatpush.xpose.msra.mxu0 0.0
          %625 = vmatpush.xpose.msra.mxu0 0.0
          %626 = vmatpush.xpose.msra.mxu0 0.0
          %627 = vmatpush.xpose.msra.mxu0 0.0
          %628 = vmatpush.xpose.msra.mxu0 0.0
          %629 = vmatpush.xpose.msra.mxu0 0.0
          %630 = vmatpush.xpose.msra.mxu0 0.0
          %631 = vmatpush.xpose.msra.mxu0 0.0
          %632 = vmatpush.xpose.msra.mxu0 %v615
          %633 = vmatmul.f32.gmra.mxu0 %v613
          %v634 = vpop.f32.mrf.mxu0
          %v635 = vadd.f32 0.0, %v634
          %636 = vdwg.mxu0
          %v637 = vadd.f32 %v635, %v511
          %v638 = vsel %vm567, %v637, %v635
          %v639 = vsel %vm537, %v638, -inf
          %640 = vmax.xlane.f32.xlu0 %v639
          %v641 = vpop.xlane.xlu0 %640
          %v642 = vmax.f32 %v522, %v641
          %v643 = vsub.f32 %v522, %v642
          %v644 = vmul.f32 %v643, 1.442695
          %v645 = vpow.pop %v644
          %v646 = vsub.f32 %v638, %v642
          %v647 = vmul.f32 %v646, 1.442695
          %v648 = vpow.pop %v647
          %v649 = vmul.f32 %v645, %v523
          %v650 = vsel %vm537, %v648, 0.0
          %651 = vadd.xlane.f32.xlu0 %v650
          %v652 = vpop.xlane.xlu0 %651
          %v653 = vadd.f32 %v649, %v652
          %v654 = vmul.f32 %v645, %v524
          %656 = vrot.lane.b32.xlu0 %v535, 120
          %v657 = vpop.permute.xlu0 %656
          %v660 = vsel %vm537, %v648, 0
          %662 = vmatpush.msra.mxu0 0.0
          %663 = vmatpush.msra.mxu0 0.0
          %664 = vmatpush.msra.mxu0 0.0
          %665 = vmatpush.msra.mxu0 0.0
          %666 = vmatpush.msra.mxu0 0.0
          %667 = vmatpush.msra.mxu0 0.0
          %668 = vmatpush.msra.mxu0 0.0
          %669 = vmatpush.msra.mxu0 0.0
          %670 = vmatpush.msra.mxu0 0.0
          %671 = vmatpush.msra.mxu0 0.0
          %672 = vmatpush.msra.mxu0 0.0
          %673 = vmatpush.msra.mxu0 0.0
          %674 = vmatpush.msra.mxu0 0.0
          %675 = vmatpush.msra.mxu0 0.0
          %676 = vmatpush.msra.mxu0 0.0
          %677 = vmatpush.msra.mxu0 %v657
          %678 = vmatmul.f32.gmra.mxu0 %v660
          %v679 = vpop.f32.mrf.mxu0
          %v680 = vadd.f32 0.0, %v679
          %681 = vdwg.mxu0
          %v682 = vadd.f32 %v654, %v680
          %683 = vrot.lane.b32.xlu0 %v505, 112
          %v684 = vpop.permute.xlu0 %683
          %685 = vrot.lane.b32.xlu0 %v533, 112
          %v686 = vpop.permute.xlu0 %685
          %v687 = vsel %vm537, %v684, 0
          %v689 = vsel %vm537, %v686, 0
          %691 = vmatpush.xpose.msra.mxu0 0.0
          %692 = vmatpush.xpose.msra.mxu0 0.0
          %693 = vmatpush.xpose.msra.mxu0 0.0
          %694 = vmatpush.xpose.msra.mxu0 0.0
          %695 = vmatpush.xpose.msra.mxu0 0.0
          %696 = vmatpush.xpose.msra.mxu0 0.0
          %697 = vmatpush.xpose.msra.mxu0 0.0
          %698 = vmatpush.xpose.msra.mxu0 0.0
          %699 = vmatpush.xpose.msra.mxu0 0.0
          %700 = vmatpush.xpose.msra.mxu0 0.0
          %701 = vmatpush.xpose.msra.mxu0 0.0
          %702 = vmatpush.xpose.msra.mxu0 0.0
          %703 = vmatpush.xpose.msra.mxu0 0.0
          %704 = vmatpush.xpose.msra.mxu0 0.0
          %705 = vmatpush.xpose.msra.mxu0 0.0
          %706 = vmatpush.xpose.msra.mxu0 %v689
          %707 = vmatmul.f32.gmra.mxu0 %v687
          %v708 = vpop.f32.mrf.mxu0
          %v709 = vadd.f32 0.0, %v708
          %710 = vdwg.mxu0
          %v711 = vadd.f32 %v709, %v511
          %v712 = vsel %vm567, %v711, %v709
          %v713 = vsel %vm537, %v712, -inf
          %714 = vmax.xlane.f32.xlu0 %v713
          %v715 = vpop.xlane.xlu0 %714
          %v716 = vmax.f32 %v525, %v715
          %v717 = vsub.f32 %v525, %v716
          %v718 = vmul.f32 %v717, 1.442695
          %v719 = vpow.pop %v718
          %v720 = vsub.f32 %v712, %v716
          %v721 = vmul.f32 %v720, 1.442695
          %v722 = vpow.pop %v721
          %v723 = vmul.f32 %v719, %v526
          %v724 = vsel %vm537, %v722, 0.0
          %725 = vadd.xlane.f32.xlu0 %v724
          %v726 = vpop.xlane.xlu0 %725
          %v727 = vadd.f32 %v723, %v726
          %v728 = vmul.f32 %v719, %v527
          %729 = vrot.lane.b32.xlu0 %v535, 112
          %v730 = vpop.permute.xlu0 %729
          %v733 = vsel %vm537, %v722, 0
          %735 = vmatpush.msra.mxu0 0.0
          %736 = vmatpush.msra.mxu0 0.0
          %737 = vmatpush.msra.mxu0 0.0
          %738 = vmatpush.msra.mxu0 0.0
          %739 = vmatpush.msra.mxu0 0.0
          %740 = vmatpush.msra.mxu0 0.0
          %741 = vmatpush.msra.mxu0 0.0
          %742 = vmatpush.msra.mxu0 0.0
          %743 = vmatpush.msra.mxu0 0.0
          %744 = vmatpush.msra.mxu0 0.0
          %745 = vmatpush.msra.mxu0 0.0
          %746 = vmatpush.msra.mxu0 0.0
          %747 = vmatpush.msra.mxu0 0.0
          %748 = vmatpush.msra.mxu0 0.0
          %749 = vmatpush.msra.mxu0 0.0
          %750 = vmatpush.msra.mxu0 %v730
          %751 = vmatmul.f32.gmra.mxu0 %v733
          %v752 = vpop.f32.mrf.mxu0
          %v753 = vadd.f32 0.0, %v752
          %754 = vdwg.mxu0
          %v755 = vadd.f32 %v728, %v753
          %756 = vrot.lane.b32.xlu0 %v505, 104
          %v757 = vpop.permute.xlu0 %756
          %758 = vrot.lane.b32.xlu0 %v533, 104
          %v759 = vpop.permute.xlu0 %758
          %v760 = vsel %vm537, %v757, 0
          %v762 = vsel %vm537, %v759, 0
          %764 = vmatpush.xpose.msra.mxu0 0.0
          %765 = vmatpush.xpose.msra.mxu0 0.0
          %766 = vmatpush.xpose.msra.mxu0 0.0
          %767 = vmatpush.xpose.msra.mxu0 0.0
          %768 = vmatpush.xpose.msra.mxu0 0.0
          %769 = vmatpush.xpose.msra.mxu0 0.0
          %770 = vmatpush.xpose.msra.mxu0 0.0
          %771 = vmatpush.xpose.msra.mxu0 0.0
          %772 = vmatpush.xpose.msra.mxu0 0.0
          %773 = vmatpush.xpose.msra.mxu0 0.0
          %774 = vmatpush.xpose.msra.mxu0 0.0
          %775 = vmatpush.xpose.msra.mxu0 0.0
          %776 = vmatpush.xpose.msra.mxu0 0.0
          %777 = vmatpush.xpose.msra.mxu0 0.0
          %778 = vmatpush.xpose.msra.mxu0 0.0
          %779 = vmatpush.xpose.msra.mxu0 %v762
          %780 = vmatmul.f32.gmra.mxu0 %v760
          %v781 = vpop.f32.mrf.mxu0
          %v782 = vadd.f32 0.0, %v781
          %783 = vdwg.mxu0
          %v784 = vadd.f32 %v782, %v511
          %v785 = vsel %vm567, %v784, %v782
          %v786 = vsel %vm537, %v785, -inf
          %787 = vmax.xlane.f32.xlu0 %v786
          %v788 = vpop.xlane.xlu0 %787
          %v789 = vmax.f32 %v528, %v788
          %v790 = vsub.f32 %v528, %v789
          %v791 = vmul.f32 %v790, 1.442695
          %v792 = vpow.pop %v791
          %v793 = vsub.f32 %v785, %v789
          %v794 = vmul.f32 %v793, 1.442695
          %v795 = vpow.pop %v794
          %v796 = vmul.f32 %v792, %v529
          %v797 = vsel %vm537, %v795, 0.0
          %798 = vadd.xlane.f32.xlu0 %v797
          %v799 = vpop.xlane.xlu0 %798
          %v800 = vadd.f32 %v796, %v799
          %v801 = vmul.f32 %v792, %v530
          %802 = vrot.lane.b32.xlu0 %v535, 104
          %v803 = vpop.permute.xlu0 %802
          %v806 = vsel %vm537, %v795, 0
          %808 = vmatpush.msra.mxu0 0.0
          %809 = vmatpush.msra.mxu0 0.0
          %810 = vmatpush.msra.mxu0 0.0
          %811 = vmatpush.msra.mxu0 0.0
          %812 = vmatpush.msra.mxu0 0.0
          %813 = vmatpush.msra.mxu0 0.0
          %814 = vmatpush.msra.mxu0 0.0
          %815 = vmatpush.msra.mxu0 0.0
          %816 = vmatpush.msra.mxu0 0.0
          %817 = vmatpush.msra.mxu0 0.0
          %818 = vmatpush.msra.mxu0 0.0
          %819 = vmatpush.msra.mxu0 0.0
          %820 = vmatpush.msra.mxu0 0.0
          %821 = vmatpush.msra.mxu0 0.0
          %822 = vmatpush.msra.mxu0 0.0
          %823 = vmatpush.msra.mxu0 %v803
          %824 = vmatmul.f32.gmra.mxu0 %v806
          %v825 = vpop.f32.mrf.mxu0
          %v826 = vadd.f32 0.0, %v825
          %827 = vdwg.mxu0
          %v828 = vadd.f32 %v801, %v826
        $region81: #{tpu_custom_call.1} parent=51 // loop_footer
          %s516 = sadd.s32 %s514, 1
        $region82: #{tpu_custom_call.1} parent=51 // loop_footer_branch
          %513 = sbr.rel target = $region78
        $region83: #{tpu_custom_call.1} parent=51 // loop_exit
          _
        %v829 = vrcp.pop %v520
        %v830 = vmul.f32 %v521, %v829
        %vm831 = vcmask 64512
        %832 = vst.msk [vmem:[#allocation4] sm:$0xff] %vm831, %v830
        %v833 = vrcp.pop %v523
        %v834 = vmul.f32 %v524, %v833
        %836 = vrot.lane.b32.xlu0 %v834, 8
        %v837 = vpop.permute.xlu0 %836
        %vm839 = vcmask 130112
        %840 = vst.msk [vmem:[#allocation4] sm:$0xff] %vm839, %v837
        %v841 = vrcp.pop %v526
        %v842 = vmul.f32 %v527, %v841
        %844 = vrot.lane.b32.xlu0 %v842, 16
        %v845 = vpop.permute.xlu0 %844
        %vm847 = vcmask 195712
        %848 = vst.msk [vmem:[#allocation4] sm:$0xff] %vm847, %v845
        %v849 = vrcp.pop %v529
        %v850 = vmul.f32 %v530, %v849
        %852 = vrot.lane.b32.xlu0 %v850, 24
        %v853 = vpop.permute.xlu0 %852
        %vm855 = vcmask 261312
        %856 = vst.msk [vmem:[#allocation4] sm:$0xff] %vm855, %v853
        %v857 = vld [vmem:[#allocation4] sm:$0xff]
        %v858 = vld [vmem:[#allocation13] sm:$0xff]
        %v859 = vld [vmem:[#allocation13 + $0x8] sm:$0xff]
        %v860 = vld [vmem:[#allocation13 + $0x10] sm:$0xff]
        %v861 = vld [vmem:[#allocation13 + $0x18] sm:$0xff]
        %v863 = vsel %vm481, %v857, 0
        %865 = vmatpush.msra.mxu0 0.0
        %866 = vmatpush.msra.mxu0 0.0
        %867 = vmatpush.msra.mxu0 0.0
        %868 = vmatpush.msra.mxu0 0.0
        %869 = vmatpush.msra.mxu0 0.0
        %870 = vmatpush.msra.mxu0 0.0
        %871 = vmatpush.msra.mxu0 0.0
        %872 = vmatpush.msra.mxu0 0.0
        %873 = vmatpush.msra.mxu0 0.0
        %874 = vmatpush.msra.mxu0 0.0
        %875 = vmatpush.msra.mxu0 0.0
        %876 = vmatpush.msra.mxu0 0.0
        %877 = vmatpush.msra.mxu0 %v861
        %878 = vmatpush.msra.mxu0 %v860
        %879 = vmatpush.msra.mxu0 %v859
        %880 = vmatpush.msra.mxu0 %v858
        %881 = vmatmul.f32.gmra.mxu0 %v863
        %v882 = vpop.f32.mrf.mxu0
        %v883 = vadd.f32 0.0, %v882
        %884 = vdwg.mxu0
        %885 = vst.msk [vmem:[%s402] sm:$0xff] %vm481, %v883
        %s886 = sand.u32 %s222, 1
        %s887 = scalar_lea.sflag [#allocation7], %s886
        %s888 = sand.u32 %s222, 1
        %s889 = smul.addr %s888, 8
        %s890 = scalar_lea.vmem [#allocation14], %s889
        // Predicated region
        $region84: #{tpu_custom_call.1} parent=51 // pred_check
          %p891 = pneg %p232
        $region85: #{tpu_custom_call.1} parent=51 // pred_check_branch
          %893 = sbr.rel (%p891) target = $region87
        $region86: #{tpu_custom_call.1} parent=51 // pred_region
          %895 = vsyncadd %s887, 0
          %s896 = sadd.s32 %s32, %s31
          %s897 = smul.addr %s896, 8
          %s898 = scalar_lea.hbm %s8, %s897
          %s900 = sshll.u32 %s890, 4
          %s901 = int_to_ptr.vmem [resolvable:$true] %s900
          %s902 = sshll.u32 %s898, 4
          %s903 = int_to_ptr.hbm [resolvable:$true] %s902
          %905 = dma.vmem_to_hbm [thread:$0]  %s901, 128, %s903, %s887
        $region87: #{tpu_custom_call.1} parent=51 // pred_fallthru
          _
      $region52: #{tpu_custom_call.1} parent=5 // pred_fallthru
        _
      %p906 = scmp.le.s32.totalorder 2, %s22
      // Predicated region
      $region88: #{tpu_custom_call.1} parent=5 // pred_check
        %p907 = pneg %p906
      $region89: #{tpu_custom_call.1} parent=5 // pred_check_branch
        %909 = sbr.rel (%p907) target = $region91
      $region90: #{tpu_custom_call.1} parent=5 // pred_region
        %s910 = ssub.s32 %s22, 2
        // Predicated region
        $region92: #{tpu_custom_call.1} parent=90 // pred_check
          %p911 = pneg %p238
        $region93: #{tpu_custom_call.1} parent=90 // pred_check_branch
          %913 = sbr.rel (%p911) target = $region95
        $region94: #{tpu_custom_call.1} parent=90 // pred_region
          %s914 = sand.u32 %s223, 1
          %s915 = scalar_lea.sflag [#allocation7], %s914
          %s916 = sand.u32 %s223, 1
          %s917 = smul.addr %s916, 8
          %s918 = scalar_lea.vmem [#allocation14], %s917
          %920 = dma.done %s915, 128
        $region95: #{tpu_custom_call.1} parent=90 // pred_fallthru
          _
      $region91: #{tpu_custom_call.1} parent=5 // pred_fallthru
        _
    $region6: #{tpu_custom_call.1} parent=1 // loop_footer
      %s26 = sadd.s32 1, %s22
    $region7: #{tpu_custom_call.1} parent=1 // loop_footer_branch
      %21 = sbr.rel target = $region3
    $region8: #{tpu_custom_call.1} parent=1 // loop_exit
      _
    %921 = vsyncpa [#allocation6], 1
    %s922 = scalar_lea.sflag [#allocation6], 1
    %923 = vsyncpa %s922, 1
    %924 = vsyncpa [#allocation9], 1
    %925 = vsyncpa [#allocation12], 1
    %926 = vsyncpa [#allocation7], 1
    %s927 = scalar_lea.sflag [#allocation7], 1
    %928 = vsyncpa %s927, 1

// kernel: tpu_custom_call.1
$region0: #{tpu_custom_call.1}
  #allocation0 [shape = 'u32[]', space=smem, size = 0x4, offset = 0x4, fixed_abs, tag = 'smem constant byte address 0x4 - core index']
  #allocation1 [shape = 'u32[72,128]{1,0:T(1,128)}', space=vmem, size = 0x9000, scoped, tag = 'internal scratch']
  #allocation2 [shape = 'f32[1,8,32]{2,1,0:T(8,128)}', space=vmem, size = 0x1000, scoped, tag = 'scratch operand']
  #allocation3 [shape = 'f32[1,8,32]{2,1,0:T(8,128)}', space=vmem, size = 0x1000, scoped, tag = 'scratch operand']
  #allocation4 [shape = 'f32[8,32]{1,0:T(8,128)}', space=vmem, size = 0x1000, scoped, tag = 'scratch operand']
  %s0 = inlined_call_operand.hbm [shape: f32[2,8,32], index: 0, kind: input, shape index: {}]
  %s1 = inlined_call_operand.hbm [shape: f32[32,32], index: 1, kind: input, shape index: {}]
  %s2 = inlined_call_operand.hbm [shape: f32[32,32], index: 2, kind: input, shape index: {}]
  %s3 = inlined_call_operand.hbm [shape: f32[32,32], index: 3, kind: input, shape index: {}]
  %s4 = inlined_call_operand.vmem [shape: f32[1,32], index: 4, kind: input, shape index: {}]
  %s5 = inlined_call_operand.vmem [shape: f32[1,32], index: 5, kind: input, shape index: {}]
  %s6 = inlined_call_operand.vmem [shape: f32[1,32], index: 6, kind: input, shape index: {}]
  %s7 = inlined_call_operand.hbm [shape: f32[32,32], index: 7, kind: input, shape index: {}]
  %s8 = inlined_call_operand.hbm [shape: f32[2,8,32], index: 8, kind: output, shape index: {}]
  %s9 = sld [smem:[#allocation0]]
  $region96: #{tpu_custom_call.1} parent=0
    _
  %s11 = ssub.s32 1, %s9
  %s12 = scalar_select 0, %s11, %s9
  $region1: #{tpu_custom_call.1} parent=0
    #allocation5 [shape = 'u8[8192]{0}', space=vmem, size = 0x2000, scoped, tag = 'input window, operand 0']
    #allocation6 [shape = 's32[2]{0}', space=sflag, size = 0x8, scoped, tag = 'scoped memory for tpu_custom_call.1']
    #allocation7 [shape = 's32[2]{0}', space=sflag, size = 0x8, scoped, tag = 'scoped memory for tpu_custom_call.1']
    #allocation8 [shape = 'u8[16384]{0}', space=vmem, size = 0x4000, scoped, tag = 'input window, operand 1, single buffered']
    #allocation9 [shape = 's32[1]{0}', space=sflag, size = 0x4, scoped, tag = 'scoped memory for tpu_custom_call.1']
    #allocation10 [shape = 'u8[16384]{0}', space=vmem, size = 0x4000, scoped, tag = 'input window, operand 2, single buffered']
    #allocation11 [shape = 'u8[16384]{0}', space=vmem, size = 0x4000, scoped, tag = 'input window, operand 3, single buffered']
    #allocation12 [shape = 's32[1]{0}', space=sflag, size = 0x4, scoped, tag = 'scoped memory for tpu_custom_call.1']
    #allocation13 [shape = 'u8[16384]{0}', space=vmem, size = 0x4000, scoped, tag = 'input window, operand 7, single buffered']
    #allocation14 [shape = 'u8[8192]{0}', space=vmem, size = 0x2000, scoped, tag = 'output window, operand 0']
    %13 = vsyncpa [#allocation6], 0
    %s14 = scalar_lea.sflag [#allocation6], 1
    %15 = vsyncpa %s14, 0
    %16 = vsyncpa [#allocation9], 0
    %17 = vsyncpa [#allocation12], 0
    %18 = vsyncpa [#allocation7], 0
    %s19 = scalar_lea.sflag [#allocation7], 1
    %20 = vsyncpa %s19, 0
    loop: start=0, step=1, limit=4
    $region2: #{tpu_custom_call.1} parent=1 // loop_pre_header
      _
    $region3: #{tpu_custom_call.1} parent=1 // loop_header
      %s22 = sphi 0, %s26
      %p23 = scmp.ge.s32.totalorder %s22, 4
      %s29 = sphi 0, %s41
      %s30 = sphi 0, %s37
      %s31 = sphi 0, %s29
      %s32 = sphi 0, %s30
      %s33 = sphi 0, %s31
      %s34 = sphi 0, %s32
      %s44 = sphi 0, %s46
      %s47 = sphi 0, %s44
      %s48 = sphi 0, %s47
      %s64 = sphi 0, %s48
      %s68 = sphi 0, %s68
      %s70 = sphi 0, %s68
      %s71 = sphi 0, %s70
      %s85 = sphi 0, %s71
      %s89 = sphi 0, %s89
      %s91 = sphi 0, %s89
      %s92 = sphi 0, %s91
      %s106 = sphi 0, %s92
      %s110 = sphi 0, %s110
      %s112 = sphi 0, %s110
      %s113 = sphi 0, %s112
      %s127 = sphi 0, %s113
      %s131 = sphi 0, %s131
      %s133 = sphi 0, %s131
      %s134 = sphi 0, %s133
      %s148 = sphi 0, %s134
      %s152 = sphi 0, %s152
      %s154 = sphi 0, %s152
      %s155 = sphi 0, %s154
      %s169 = sphi 0, %s155
      %s173 = sphi 0, %s173
      %s175 = sphi 0, %s173
      %s176 = sphi 0, %s175
      %s190 = sphi 0, %s176
      %s194 = sphi 0, %s194
      %s196 = sphi 0, %s194
      %s197 = sphi 0, %s196
      %s211 = sphi 0, %s197
      %s219 = sphi 0, %s221
      %s222 = sphi 0, %s219
      %s223 = sphi 0, %s222
      %s239 = sphi 0, %s223
    $region4: #{tpu_custom_call.1} parent=1 // loop_header_branch
      %25 = sbr.rel (%p23) target = $region8
    $region5: #{tpu_custom_call.1} parent=1 // loop_body
      %s27 = ssub.s32 %s22, 1
      %s28 = ssub.s32 %s22, 2
      %s35 = sadd.s32 1, %s30
      %p36 = scmp.ge.s32.totalorder %s35, 1
      %s37 = scalar_select %p36, 0, %s35
      %s38 = sadd.s32 1, %s29
      %s39 = scalar_select %p36, %s38, %s29
      %p40 = scmp.ge.s32.totalorder %s39, 2
      %s41 = scalar_select %p40, 0, %s39
      %s42 = ssub.s32 %s29, %s41
      %p43 = scmp.eq.s32.totalorder %s42, 0
      %s45 = sadd.s32 %s44, 1
      %s46 = scalar_select %p43, %s44, %s45
      %p49 = pneg %p43
      %p50 = scmp.eq.s32.totalorder %s22, 1
      %p51 = por %p49, %p50
      %p52 = scmp.ne.s32.totalorder %s44, %s47
      %p53 = scmp.eq.s32.totalorder %s22, 0
      %p54 = por %p52, %p53
      %p55 = scmp.ne.s32.totalorder %s44, %s47
      %p56 = scmp.eq.s32.totalorder %s27, 1
      %p57 = por %p55, %p56
      %p58 = scmp.ne.s32.totalorder %s47, %s48
      %p59 = scmp.eq.s32.totalorder %s27, 0
      %p60 = por %p58, %p59
      %p61 = scmp.ne.s32.totalorder %s47, %s48
      %p62 = scmp.eq.s32.totalorder %s28, 1
      %p63 = por %p61, %p62
      %p65 = scmp.ne.s32.totalorder %s48, %s64
      %p66 = scmp.eq.s32.totalorder %s28, 0
      %p67 = por %p65, %p66
      %s69 = sadd.s32 %s68, 1
      %p72 = scmp.eq.s32.totalorder %s22, 1
      %p73 = scmp.ne.s32.totalorder %s68, %s70
      %p74 = scmp.eq.s32.totalorder %s22, 0
      %p75 = por %p73, %p74
      %p76 = scmp.ne.s32.totalorder %s68, %s70
      %p77 = scmp.eq.s32.totalorder %s27, 1
      %p78 = por %p76, %p77
      %p79 = scmp.ne.s32.totalorder %s70, %s71
      %p80 = scmp.eq.s32.totalorder %s27, 0
      %p81 = por %p79, %p80
      %p82 = scmp.ne.s32.totalorder %s70, %s71
      %p83 = scmp.eq.s32.totalorder %s28, 1
      %p84 = por %p82, %p83
      %p86 = scmp.ne.s32.totalorder %s71, %s85
      %p87 = scmp.eq.s32.totalorder %s28, 0
      %p88 = por %p86, %p87
      %s90 = sadd.s32 %s89, 1
      %p93 = scmp.eq.s32.totalorder %s22, 1
      %p94 = scmp.ne.s32.totalorder %s89, %s91
      %p95 = scmp.eq.s32.totalorder %s22, 0
      %p96 = por %p94, %p95
      %p97 = scmp.ne.s32.totalorder %s89, %s91
      %p98 = scmp.eq.s32.totalorder %s27, 1
      %p99 = por %p97, %p98
      %p100 = scmp.ne.s32.totalorder %s91, %s92
      %p101 = scmp.eq.s32.totalorder %s27, 0
      %p102 = por %p100, %p101
      %p103 = scmp.ne.s32.totalorder %s91, %s92
      %p104 = scmp.eq.s32.totalorder %s28, 1
      %p105 = por %p103, %p104
      %p107 = scmp.ne.s32.totalorder %s92, %s106
      %p108 = scmp.eq.s32.totalorder %s28, 0
      %p109 = por %p107, %p108
      %s111 = sadd.s32 %s110, 1
      %p114 = scmp.eq.s32.totalorder %s22, 1
      %p115 = scmp.ne.s32.totalorder %s110, %s112
      %p116 = scmp.eq.s32.totalorder %s22, 0
      %p117 = por %p115, %p116
      %p118 = scmp.ne.s32.totalorder %s110, %s112
      %p119 = scmp.eq.s32.totalorder %s27, 1
      %p120 = por %p118, %p119
      %p121 = scmp.ne.s32.totalorder %s112, %s113
      %p122 = scmp.eq.s32.totalorder %s27, 0
      %p123 = por %p121, %p122
      %p124 = scmp.ne.s32.totalorder %s112, %s113
      %p125 = scmp.eq.s32.totalorder %s28, 1
      %p126 = por %p124, %p125
      %p128 = scmp.ne.s32.totalorder %s113, %s127
      %p129 = scmp.eq.s32.totalorder %s28, 0
      %p130 = por %p128, %p129
      %s132 = sadd.s32 %s131, 1
      %p135 = scmp.eq.s32.totalorder %s22, 1
      %p136 = scmp.ne.s32.totalorder %s131, %s133
      %p137 = scmp.eq.s32.totalorder %s22, 0
      %p138 = por %p136, %p137
      %p139 = scmp.ne.s32.totalorder %s131, %s133
      %p140 = scmp.eq.s32.totalorder %s27, 1
      %p141 = por %p139, %p140
      %p142 = scmp.ne.s32.totalorder %s133, %s134
      %p143 = scmp.eq.s32.totalorder %s27, 0
      %p144 = por %p142, %p143
      %p145 = scmp.ne.s32.totalorder %s133, %s134
      %p146 = scmp.eq.s32.totalorder %s28, 1
      %p147 = por %p145, %p146
      %p149 = scmp.ne.s32.totalorder %s134, %s148
      %p150 = scmp.eq.s32.totalorder %s28, 0
      %p151 = por %p149, %p150
      %s153 = sadd.s32 %s152, 1
      %p156 = scmp.eq.s32.totalorder %s22, 1
      %p157 = scmp.ne.s32.totalorder %s152, %s154
      %p158 = scmp.eq.s32.totalorder %s22, 0
      %p159 = por %p157, %p158
      %p160 = scmp.ne.s32.totalorder %s152, %s154
      %p161 = scmp.eq.s32.totalorder %s27, 1
      %p162 = por %p160, %p161
      %p163 = scmp.ne.s32.totalorder %s154, %s155
      %p164 = scmp.eq.s32.totalorder %s27, 0
      %p165 = por %p163, %p164
      %p166 = scmp.ne.s32.totalorder %s154, %s155
      %p167 = scmp.eq.s32.totalorder %s28, 1
      %p168 = por %p166, %p167
      %p170 = scmp.ne.s32.totalorder %s155, %s169
      %p171 = scmp.eq.s32.totalorder %s28, 0
      %p172 = por %p170, %p171
      %s174 = sadd.s32 %s173, 1
      %p177 = scmp.eq.s32.totalorder %s22, 1
      %p178 = scmp.ne.s32.totalorder %s173, %s175
      %p179 = scmp.eq.s32.totalorder %s22, 0
      %p180 = por %p178, %p179
      %p181 = scmp.ne.s32.totalorder %s173, %s175
      %p182 = scmp.eq.s32.totalorder %s27, 1
      %p183 = por %p181, %p182
      %p184 = scmp.ne.s32.totalorder %s175, %s176
      %p185 = scmp.eq.s32.totalorder %s27, 0
      %p186 = por %p184, %p185
      %p187 = scmp.ne.s32.totalorder %s175, %s176
      %p188 = scmp.eq.s32.totalorder %s28, 1
      %p189 = por %p187, %p188
      %p191 = scmp.ne.s32.totalorder %s176, %s190
      %p192 = scmp.eq.s32.totalorder %s28, 0
      %p193 = por %p191, %p192
      %s195 = sadd.s32 %s194, 1
      %p198 = scmp.eq.s32.totalorder %s22, 1
      %p199 = scmp.ne.s32.totalorder %s194, %s196
      %p200 = scmp.eq.s32.totalorder %s22, 0
      %p201 = por %p199, %p200
      %p202 = scmp.ne.s32.totalorder %s194, %s196
      %p203 = scmp.eq.s32.totalorder %s27, 1
      %p204 = por %p202, %p203
      %p205 = scmp.ne.s32.totalorder %s196, %s197
      %p206 = scmp.eq.s32.totalorder %s27, 0
      %p207 = por %p205, %p206
      %p208 = scmp.ne.s32.totalorder %s196, %s197
      %p209 = scmp.eq.s32.totalorder %s28, 1
      %p210 = por %p208, %p209
      %p212 = scmp.ne.s32.totalorder %s197, %s211
      %p213 = scmp.eq.s32.totalorder %s28, 0
      %p214 = por %p212, %p213
      %s215 = ssub.s32 %s29, %s41
      %s216 = ssub.s32 %s30, %s37
      %s217 = sor.u32 %s215, %s216
      %p218 = scmp.eq.s32.totalorder %s217, 0
      %s220 = sadd.s32 %s219, 1
      %s221 = scalar_select %p218, %s219, %s220
      %p224 = pneg %p218
      %p225 = scmp.eq.s32.totalorder %s22, 1
      %p226 = por %p224, %p225
      %p227 = scmp.ne.s32.totalorder %s219, %s222
      %p228 = scmp.eq.s32.totalorder %s22, 0
      %p229 = por %p227, %p228
      %p230 = scmp.ne.s32.totalorder %s219, %s222
      %p231 = scmp.eq.s32.totalorder %s27, 1
      %p232 = por %p230, %p231
      %p233 = scmp.ne.s32.totalorder %s222, %s223
      %p234 = scmp.eq.s32.totalorder %s27, 0
      %p235 = por %p233, %p234
      %p236 = scmp.ne.s32.totalorder %s222, %s223
      %p237 = scmp.eq.s32.totalorder %s28, 1
      %p238 = por %p236, %p237
      %p240 = scmp.ne.s32.totalorder %s223, %s239
      %p241 = scmp.eq.s32.totalorder %s28, 0
      %p242 = por %p240, %p241
      %p243 = scmp.le.s32.totalorder 1, %s22
      %p244 = scmp.lt.s32.totalorder %s22, 3
      %p245 = pnand %p243, %p244
      %p246 = pneg %p245
      // Predicated region
      $region9: #{tpu_custom_call.1} parent=5 // pred_check
        _
      $region10: #{tpu_custom_call.1} parent=5 // pred_check_branch
        %248 = sbr.rel (%p245) target = $region12
      $region11: #{tpu_custom_call.1} parent=5 // pred_region
        %s249 = ssub.s32 %s22, 1
        // Predicated region
        $region13: #{tpu_custom_call.1} parent=11 // pred_check
          %p250 = pneg %p81
        $region14: #{tpu_custom_call.1} parent=11 // pred_check_branch
          %252 = sbr.rel (%p250) target = $region16
        $region15: #{tpu_custom_call.1} parent=11 // pred_region
          %254 = vsyncadd [#allocation9], 0
          %s255 = sshll.u32 %s1, 4
          %s256 = int_to_ptr.hbm [resolvable:$true] %s255
          %s257 = sshll.u32 [#allocation8], 4
          %s258 = int_to_ptr.vmem [resolvable:$true] %s257
          %263 = dma.hbm_to_vmem [thread:$0]  %s256, 512, %s258, [#allocation9], 128, 128, 8
        $region16: #{tpu_custom_call.1} parent=11 // pred_fallthru
          _
        // Predicated region
        $region17: #{tpu_custom_call.1} parent=11 // pred_check
          %p264 = pneg %p102
        $region18: #{tpu_custom_call.1} parent=11 // pred_check_branch
          %266 = sbr.rel (%p264) target = $region20
        $region19: #{tpu_custom_call.1} parent=11 // pred_region
          %268 = vsyncadd [#allocation9], 0
          %s269 = sshll.u32 %s2, 4
          %s270 = int_to_ptr.hbm [resolvable:$true] %s269
          %s271 = sshll.u32 [#allocation10], 4
          %s272 = int_to_ptr.vmem [resolvable:$true] %s271
          %277 = dma.hbm_to_vmem [thread:$0]  %s270, 512, %s272, [#allocation9], 128, 128, 8
        $region20: #{tpu_custom_call.1} parent=11 // pred_fallthru
          _
        // Predicated region
        $region21: #{tpu_custom_call.1} parent=11 // pred_check
          %p278 = pneg %p123
        $region22: #{tpu_custom_call.1} parent=11 // pred_check_branch
          %280 = sbr.rel (%p278) target = $region24
        $region23: #{tpu_custom_call.1} parent=11 // pred_region
          %282 = vsyncadd [#allocation12], 0
          %s283 = sshll.u32 %s3, 4
          %s284 = int_to_ptr.hbm [resolvable:$true] %s283
          %s285 = sshll.u32 [#allocation11], 4
          %s286 = int_to_ptr.vmem [resolvable:$true] %s285
          %291 = dma.hbm_to_vmem [thread:$0]  %s284, 512, %s286, [#allocation12], 128, 128, 8
        $region24: #{tpu_custom_call.1} parent=11 // pred_fallthru
          _
        // Predicated region
        $region25: #{tpu_custom_call.1} parent=11 // pred_check
          %p292 = pneg %p144
        $region26: #{tpu_custom_call.1} parent=11 // pred_check_branch
          %294 = sbr.rel (%p292) target = $region28
        $region27: #{tpu_custom_call.1} parent=11 // pred_region
          _
        $region28: #{tpu_custom_call.1} parent=11 // pred_fallthru
          _
        // Predicated region
        $region29: #{tpu_custom_call.1} parent=11 // pred_check
          %p295 = pneg %p165
        $region30: #{tpu_custom_call.1} parent=11 // pred_check_branch
          %297 = sbr.rel (%p295) target = $region32
        $region31: #{tpu_custom_call.1} parent=11 // pred_region
          _
        $region32: #{tpu_custom_call.1} parent=11 // pred_fallthru
          _
        // Predicated region
        $region33: #{tpu_custom_call.1} parent=11 // pred_check
          %p298 = pneg %p186
        $region34: #{tpu_custom_call.1} parent=11 // pred_check_branch
          %300 = sbr.rel (%p298) target = $region36
        $region35: #{tpu_custom_call.1} parent=11 // pred_region
          _
        $region36: #{tpu_custom_call.1} parent=11 // pred_fallthru
          _
        // Predicated region
        $region37: #{tpu_custom_call.1} parent=11 // pred_check
          %p301 = pneg %p207
        $region38: #{tpu_custom_call.1} parent=11 // pred_check_branch
          %303 = sbr.rel (%p301) target = $region40
        $region39: #{tpu_custom_call.1} parent=11 // pred_region
          %305 = vsyncadd [#allocation12], 0
          %s306 = sshll.u32 %s7, 4
          %s307 = int_to_ptr.hbm [resolvable:$true] %s306
          %s308 = sshll.u32 [#allocation13], 4
          %s309 = int_to_ptr.vmem [resolvable:$true] %s308
          %314 = dma.hbm_to_vmem [thread:$0]  %s307, 512, %s309, [#allocation12], 128, 128, 8
        $region40: #{tpu_custom_call.1} parent=11 // pred_fallthru
          _
      $region12: #{tpu_custom_call.1} parent=5 // pred_fallthru
        _
      %p315 = scmp.lt.s32.totalorder %s22, 2
      // Predicated region
      $region41: #{tpu_custom_call.1} parent=5 // pred_check
        %p316 = pneg %p315
      $region42: #{tpu_custom_call.1} parent=5 // pred_check_branch
        %318 = sbr.rel (%p316) target = $region44
      $region43: #{tpu_custom_call.1} parent=5 // pred_region
        // Predicated region
        $region45: #{tpu_custom_call.1} parent=43 // pred_check
          %p319 = pneg %p54
        $region46: #{tpu_custom_call.1} parent=43 // pred_check_branch
          %321 = sbr.rel (%p319) target = $region48
        $region47: #{tpu_custom_call.1} parent=43 // pred_region
          %s322 = sand.u32 %s44, 1
          %s323 = scalar_lea.sflag [#allocation6], %s322
          %s324 = sand.u32 %s44, 1
          %s325 = smul.addr %s324, 8
          %s326 = scalar_lea.vmem [#allocation5], %s325
          %328 = vsyncadd %s323, 0
          %s329 = smul.addr %s29, 8
          %s330 = scalar_lea.hbm %s0, %s329
          %s332 = sshll.u32 %s330, 4
          %s333 = int_to_ptr.hbm [resolvable:$true] %s332
          %s334 = sshll.u32 %s326, 4
          %s335 = int_to_ptr.vmem [resolvable:$true] %s334
          %337 = dma.hbm_to_vmem [thread:$0]  %s333, 128, %s335, %s323
        $region48: #{tpu_custom_call.1} parent=43 // pred_fallthru
          _
      $region44: #{tpu_custom_call.1} parent=5 // pred_fallthru
        _
      %p338 = scmp.le.s32.totalorder 1, %s22
      %p339 = scmp.lt.s32.totalorder %s22, 3
      %p340 = pnand %p338, %p339
      %p341 = pneg %p340
      // Predicated region
      $region49: #{tpu_custom_call.1} parent=5 // pred_check
        _
      $region50: #{tpu_custom_call.1} parent=5 // pred_check_branch
        %343 = sbr.rel (%p340) target = $region52
      $region51: #{tpu_custom_call.1} parent=5 // pred_region
        %s344 = ssub.s32 %s22, 1
        %s345 = sand.u32 %s47, 1
        %s346 = scalar_lea.sflag [#allocation6], %s345
        %s347 = sand.u32 %s47, 1
        %s348 = smul.addr %s347, 8
        %s349 = scalar_lea.vmem [#allocation5], %s348
        // Predicated region
        $region53: #{tpu_custom_call.1} parent=51 // pred_check
          %p350 = pneg %p60
        $region54: #{tpu_custom_call.1} parent=51 // pred_check_branch
          %352 = sbr.rel (%p350) target = $region56
        $region55: #{tpu_custom_call.1} parent=51 // pred_region
          %354 = dma.done %s346, 128
        $region56: #{tpu_custom_call.1} parent=51 // pred_fallthru
          _
        // Predicated region
        $region57: #{tpu_custom_call.1} parent=51 // pred_check
          %p355 = pneg %p81
        $region58: #{tpu_custom_call.1} parent=51 // pred_check_branch
          %357 = sbr.rel (%p355) target = $region60
        $region59: #{tpu_custom_call.1} parent=51 // pred_region
          %359 = dma.done [#allocation9], 512
        $region60: #{tpu_custom_call.1} parent=51 // pred_fallthru
          _
        // Predicated region
        $region61: #{tpu_custom_call.1} parent=51 // pred_check
          %p360 = pneg %p102
        $region62: #{tpu_custom_call.1} parent=51 // pred_check_branch
          %362 = sbr.rel (%p360) target = $region64
        $region63: #{tpu_custom_call.1} parent=51 // pred_region
          %364 = dma.done [#allocation9], 512
        $region64: #{tpu_custom_call.1} parent=51 // pred_fallthru
          _
        // Predicated region
        $region65: #{tpu_custom_call.1} parent=51 // pred_check
          %p365 = pneg %p123
        $region66: #{tpu_custom_call.1} parent=51 // pred_check_branch
          %367 = sbr.rel (%p365) target = $region68
        $region67: #{tpu_custom_call.1} parent=51 // pred_region
          %369 = dma.done [#allocation12], 512
        $region68: #{tpu_custom_call.1} parent=51 // pred_fallthru
          _
        // Predicated region
        $region69: #{tpu_custom_call.1} parent=51 // pred_check
          %p370 = pneg %p207
        $region70: #{tpu_custom_call.1} parent=51 // pred_check_branch
          %372 = sbr.rel (%p370) target = $region72
        $region71: #{tpu_custom_call.1} parent=51 // pred_region
          %374 = dma.done [#allocation12], 512
        $region72: #{tpu_custom_call.1} parent=51 // pred_fallthru
          _
        %s375 = sand.u32 %s47, 1
        %s376 = scalar_lea.sflag [#allocation6], %s375
        %s377 = sand.u32 %s47, 1
        %s378 = smul.addr %s377, 8
        %s379 = scalar_lea.vmem [#allocation5], %s378
        %p380 = pneg %p60
        %p381 = pneg %p57
        %p382 = pneg %p81
        %p383 = pneg %p78
        %p384 = pneg %p102
        %p385 = pneg %p99
        %p386 = pneg %p123
        %p387 = pneg %p120
        %p388 = pneg %p144
        %p389 = pneg %p141
        %p390 = pneg %p165
        %p391 = pneg %p162
        %p392 = pneg %p186
        %p393 = pneg %p183
        %p394 = pneg %p207
        %p395 = pneg %p204
        %p396 = pneg %p235
        %p397 = pneg %p232
        %s398 = sand.u32 %s222, 1
        %s399 = scalar_lea.sflag [#allocation7], %s398
        %s400 = sand.u32 %s222, 1
        %s401 = smul.addr %s400, 8
        %s402 = scalar_lea.vmem [#allocation14], %s401
        %p403 = scmp.eq.s32.totalorder %s32, 0
        // Predicated region
        $region73: #{tpu_custom_call.1} parent=51 // pred_check
          %p404 = pneg %p403
        $region74: #{tpu_custom_call.1} parent=51 // pred_check_branch
          %406 = sbr.rel (%p404) target = $region76
        $region75: #{tpu_custom_call.1} parent=51 // pred_region
          %v407 = vld [vmem:[%s349] sm:$0xff]
          %v408 = vld [vmem:[#allocation10] sm:$0xff]
          %v409 = vld [vmem:[#allocation10 + $0x8] sm:$0xff]
          %v410 = vld [vmem:[#allocation10 + $0x10] sm:$0xff]
          %v411 = vld [vmem:[#allocation10 + $0x18] sm:$0xff]
          %v412 = vld [vmem:[%s5] sm:$0x1]
          %v414 = vperm.slane %v412, 0
          %vm416 = vcmask 261120
          %v418 = vsel %vm416, %v407, 0
          %420 = vmatpush.msra.mxu0 0.0
          %421 = vmatpush.msra.mxu0 0.0
          %422 = vmatpush.msra.mxu0 0.0
          %423 = vmatpush.msra.mxu0 0.0
          %424 = vmatpush.msra.mxu0 0.0
          %425 = vmatpush.msra.mxu0 0.0
          %426 = vmatpush.msra.mxu0 0.0
          %427 = vmatpush.msra.mxu0 0.0
          %428 = vmatpush.msra.mxu0 0.0
          %429 = vmatpush.msra.mxu0 0.0
          %430 = vmatpush.msra.mxu0 0.0
          %431 = vmatpush.msra.mxu0 0.0
          %432 = vmatpush.msra.mxu0 %v411
          %433 = vmatpush.msra.mxu0 %v410
          %434 = vmatpush.msra.mxu0 %v409
          %435 = vmatpush.msra.mxu0 %v408
          %436 = vmatmul.f32.gmra.mxu0 %v418
          %v437 = vpop.f32.mrf.mxu0
          %v438 = vadd.f32 %v414, %v437
          %439 = vdwg.mxu0
          %v440 = vld [vmem:[#allocation11] sm:$0xff]
          %v441 = vld [vmem:[#allocation11 + $0x8] sm:$0xff]
          %v442 = vld [vmem:[#allocation11 + $0x10] sm:$0xff]
          %v443 = vld [vmem:[#allocation11 + $0x18] sm:$0xff]
          %v444 = vld [vmem:[%s6] sm:$0x1]
          %v446 = vperm.slane %v444, 0
          %448 = vmatpush.msra.mxu0 0.0
          %449 = vmatpush.msra.mxu0 0.0
          %450 = vmatpush.msra.mxu0 0.0
          %451 = vmatpush.msra.mxu0 0.0
          %452 = vmatpush.msra.mxu0 0.0
          %453 = vmatpush.msra.mxu0 0.0
          %454 = vmatpush.msra.mxu0 0.0
          %455 = vmatpush.msra.mxu0 0.0
          %456 = vmatpush.msra.mxu0 0.0
          %457 = vmatpush.msra.mxu0 0.0
          %458 = vmatpush.msra.mxu0 0.0
          %459 = vmatpush.msra.mxu0 0.0
          %460 = vmatpush.msra.mxu0 %v443
          %461 = vmatpush.msra.mxu0 %v442
          %462 = vmatpush.msra.mxu0 %v441
          %463 = vmatpush.msra.mxu0 %v440
          %464 = vmatmul.f32.gmra.mxu0 %v418
          %v465 = vpop.f32.mrf.mxu0
          %v466 = vadd.f32 %v446, %v465
          %467 = vdwg.mxu0
          %468 = vst.msk [vmem:[#allocation2] sm:$0xff] %vm416, %v438
          %469 = vst.msk [vmem:[#allocation3] sm:$0xff] %vm416, %v466
        $region76: #{tpu_custom_call.1} parent=51 // pred_fallthru
          _
        %s470 = smul.u32 %s32, 8
        %s471 = scalar_lea.vmem %s349, %s470 [#allocation5]
        %v472 = vld [vmem:[%s471] sm:$0xff]
        %v473 = vld [vmem:[#allocation8] sm:$0xff]
        %v474 = vld [vmem:[#allocation8 + $0x8] sm:$0xff]
        %v475 = vld [vmem:[#allocation8 + $0x10] sm:$0xff]
        %v476 = vld [vmem:[#allocation8 + $0x18] sm:$0xff]
        %v477 = vld [vmem:[%s4] sm:$0x1]
        %v479 = vperm.slane %v477, 0
        %vm481 = vcmask 261120
        %v483 = vsel %vm481, %v472, 0
        %485 = vmatpush.msra.mxu0 0.0
        %486 = vmatpush.msra.mxu0 0.0
        %487 = vmatpush.msra.mxu0 0.0
        %488 = vmatpush.msra.mxu0 0.0
        %489 = vmatpush.msra.mxu0 0.0
        %490 = vmatpush.msra.mxu0 0.0
        %491 = vmatpush.msra.mxu0 0.0
        %492 = vmatpush.msra.mxu0 0.0
        %493 = vmatpush.msra.mxu0 0.0
        %494 = vmatpush.msra.mxu0 0.0
        %495 = vmatpush.msra.mxu0 0.0
        %496 = vmatpush.msra.mxu0 0.0
        %497 = vmatpush.msra.mxu0 %v476
        %498 = vmatpush.msra.mxu0 %v475
        %499 = vmatpush.msra.mxu0 %v474
        %500 = vmatpush.msra.mxu0 %v473
        %501 = vmatmul.f32.gmra.mxu0 %v483
        %v502 = vpop.f32.mrf.mxu0
        %v503 = vadd.f32 %v479, %v502
        %504 = vdwg.mxu0
        %v505 = vmul.f32 %v503, 0.17677669
        %v506 = vlaneseq
        %v507 = vshrl.u32 %v506, 7
        %v508 = vlaneseq
        %v509 = vand.u32 %v508, 127
        %vm510 = vcmp.ge.s32.totalorder %v507, %v509
        %v511 = vsel %vm510, 0.0, -1e+30
        %s512 = sadd.s32 %s32, 1
        // While loop
        $region77: #{tpu_custom_call.1} parent=51 // loop_pre_header
          _
        $region78: #{tpu_custom_call.1} parent=51 // loop_header
          %s514 = sphi 0, %s516
          %p515 = scmp.ge.s32.totalorder %s514, %s512
          %v519 = vphi -1e+30, %v572
          %v520 = vphi 0.0, %v583
          %v521 = vphi 0.0, %v608
          %v522 = vphi -1e+30, %v642
          %v523 = vphi 0.0, %v653
          %v524 = vphi 0.0, %v682
          %v525 = vphi -1e+30, %v716
          %v526 = vphi 0.0, %v727
          %v527 = vphi 0.0, %v755
          %v528 = vphi -1e+30, %v789
          %v529 = vphi 0.0, %v800
          %v530 = vphi 0.0, %v828
        $region79: #{tpu_custom_call.1} parent=51 // loop_header_branch
          %518 = sbr.rel (%p515) target = $region83
        $region80: #{tpu_custom_call.1} parent=51 // loop_body
          %s531 = smul.u32 %s514, 8
          %s532 = scalar_lea.vmem [#allocation2], %s531
          %v533 = vld [vmem:[%s532] sm:$0xff]
          %s534 = scalar_lea.vmem [#allocation3], %s531
          %v535 = vld [vmem:[%s534] sm:$0xff]
          %p536 = scmp.eq.s32.totalorder %s514, %s32
          %vm537 = vcmask 64512
          %v539 = vsel %vm537, %v505, 0
          %v542 = vsel %vm537, %v533, 0
          %544 = vmatpush.xpose.msra.mxu0 0.0
          %545 = vmatpush.xpose.msra.mxu0 0.0
          %546 = vmatpush.xpose.msra.mxu0 0.0
          %547 = vmatpush.xpose.msra.mxu0 0.0
          %548 = vmatpush.xpose.msra.mxu0 0.0
          %549 = vmatpush.xpose.msra.mxu0 0.0
          %550 = vmatpush.xpose.msra.mxu0 0.0
          %551 = vmatpush.xpose.msra.mxu0 0.0
          %552 = vmatpush.xpose.msra.mxu0 0.0
          %553 = vmatpush.xpose.msra.mxu0 0.0
          %554 = vmatpush.xpose.msra.mxu0 0.0
          %555 = vmatpush.xpose.msra.mxu0 0.0
          %556 = vmatpush.xpose.msra.mxu0 0.0
          %557 = vmatpush.xpose.msra.mxu0 0.0
          %558 = vmatpush.xpose.msra.mxu0 0.0
          %559 = vmatpush.xpose.msra.mxu0 %v542
          %560 = vmatmul.f32.gmra.mxu0 %v539
          %v561 = vpop.f32.mrf.mxu0
          %v562 = vadd.f32 0.0, %v561
          %563 = vdwg.mxu0
          %v564 = vadd.f32 %v562, %v511
          %s565 = scalar_select %p536, 1, 0
          %v566 = vstv %s565
          %vm567 = vcmp.eq.s32.totalorder %v566, 1
          %v568 = vsel %vm567, %v564, %v562
          %v569 = vsel %vm537, %v568, -inf
          %570 = vmax.xlane.f32.xlu0 %v569
          %v571 = vpop.xlane.xlu0 %570
          %v572 = vmax.f32 %v519, %v571
          %v573 = vsub.f32 %v519, %v572
          %v574 = vmul.f32 %v573, 1.442695
          %v575 = vpow.pop %v574
          %v576 = vsub.f32 %v568, %v572
          %v577 = vmul.f32 %v576, 1.442695
          %v578 = vpow.pop %v577
          %v579 = vmul.f32 %v575, %v520
          %v580 = vsel %vm537, %v578, 0.0
          %581 = vadd.xlane.f32.xlu0 %v580
          %v582 = vpop.xlane.xlu0 %581
          %v583 = vadd.f32 %v579, %v582
          %v584 = vmul.f32 %v575, %v521
          %v586 = vsel %vm537, %v578, 0
          %588 = vmatpush.msra.mxu0 0.0
          %589 = vmatpush.msra.mxu0 0.0
          %590 = vmatpush.msra.mxu0 0.0
          %591 = vmatpush.msra.mxu0 0.0
          %592 = vmatpush.msra.mxu0 0.0
          %593 = vmatpush.msra.mxu0 0.0
          %594 = vmatpush.msra.mxu0 0.0
          %595 = vmatpush.msra.mxu0 0.0
          %596 = vmatpush.msra.mxu0 0.0
          %597 = vmatpush.msra.mxu0 0.0
          %598 = vmatpush.msra.mxu0 0.0
          %599 = vmatpush.msra.mxu0 0.0
          %600 = vmatpush.msra.mxu0 0.0
          %601 = vmatpush.msra.mxu0 0.0
          %602 = vmatpush.msra.mxu0 0.0
          %603 = vmatpush.msra.mxu0 %v535
          %604 = vmatmul.f32.gmra.mxu0 %v586
          %v605 = vpop.f32.mrf.mxu0
          %v606 = vadd.f32 0.0, %v605
          %607 = vdwg.mxu0
          %v608 = vadd.f32 %v584, %v606
          %609 = vrot.lane.b32.xlu0 %v505, 120
          %v610 = vpop.permute.xlu0 %609
          %611 = vrot.lane.b32.xlu0 %v533, 120
          %v612 = vpop.permute.xlu0 %611
          %v613 = vsel %vm537, %v610, 0
          %v615 = vsel %vm537, %v612, 0
          %617 = vmatpush.xpose.msra.mxu0 0.0
          %618 = vmatpush.xpose.msra.mxu0 0.0
          %619 = vmatpush.xpose.msra.mxu0 0.0
          %620 = vmatpush.xpose.msra.mxu0 0.0
          %621 = vmatpush.xpose.msra.mxu0 0.0
          %622 = vmatpush.xpose.msra.mxu0 0.0
          %623 = vmatpush.xpose.msra.mxu0 0.0
          %624 = vmatpush.xpose.msra.mxu0 0.0
          %625 = vmatpush.xpose.msra.mxu0 0.0
          %626 = vmatpush.xpose.msra.mxu0 0.0
          %627 = vmatpush.xpose.msra.mxu0 0.0
          %628 = vmatpush.xpose.msra.mxu0 0.0
          %629 = vmatpush.xpose.msra.mxu0 0.0
          %630 = vmatpush.xpose.msra.mxu0 0.0
          %631 = vmatpush.xpose.msra.mxu0 0.0
          %632 = vmatpush.xpose.msra.mxu0 %v615
          %633 = vmatmul.f32.gmra.mxu0 %v613
          %v634 = vpop.f32.mrf.mxu0
          %v635 = vadd.f32 0.0, %v634
          %636 = vdwg.mxu0
          %v637 = vadd.f32 %v635, %v511
          %v638 = vsel %vm567, %v637, %v635
          %v639 = vsel %vm537, %v638, -inf
          %640 = vmax.xlane.f32.xlu0 %v639
          %v641 = vpop.xlane.xlu0 %640
          %v642 = vmax.f32 %v522, %v641
          %v643 = vsub.f32 %v522, %v642
          %v644 = vmul.f32 %v643, 1.442695
          %v645 = vpow.pop %v644
          %v646 = vsub.f32 %v638, %v642
          %v647 = vmul.f32 %v646, 1.442695
          %v648 = vpow.pop %v647
          %v649 = vmul.f32 %v645, %v523
          %v650 = vsel %vm537, %v648, 0.0
          %651 = vadd.xlane.f32.xlu0 %v650
          %v652 = vpop.xlane.xlu0 %651
          %v653 = vadd.f32 %v649, %v652
          %v654 = vmul.f32 %v645, %v524
          %656 = vrot.lane.b32.xlu0 %v535, 120
          %v657 = vpop.permute.xlu0 %656
          %v660 = vsel %vm537, %v648, 0
          %662 = vmatpush.msra.mxu0 0.0
          %663 = vmatpush.msra.mxu0 0.0
          %664 = vmatpush.msra.mxu0 0.0
          %665 = vmatpush.msra.mxu0 0.0
          %666 = vmatpush.msra.mxu0 0.0
          %667 = vmatpush.msra.mxu0 0.0
          %668 = vmatpush.msra.mxu0 0.0
          %669 = vmatpush.msra.mxu0 0.0
          %670 = vmatpush.msra.mxu0 0.0
          %671 = vmatpush.msra.mxu0 0.0
          %672 = vmatpush.msra.mxu0 0.0
          %673 = vmatpush.msra.mxu0 0.0
          %674 = vmatpush.msra.mxu0 0.0
          %675 = vmatpush.msra.mxu0 0.0
          %676 = vmatpush.msra.mxu0 0.0
          %677 = vmatpush.msra.mxu0 %v657
          %678 = vmatmul.f32.gmra.mxu0 %v660
          %v679 = vpop.f32.mrf.mxu0
          %v680 = vadd.f32 0.0, %v679
          %681 = vdwg.mxu0
          %v682 = vadd.f32 %v654, %v680
          %683 = vrot.lane.b32.xlu0 %v505, 112
          %v684 = vpop.permute.xlu0 %683
          %685 = vrot.lane.b32.xlu0 %v533, 112
          %v686 = vpop.permute.xlu0 %685
          %v687 = vsel %vm537, %v684, 0
          %v689 = vsel %vm537, %v686, 0
          %691 = vmatpush.xpose.msra.mxu0 0.0
          %692 = vmatpush.xpose.msra.mxu0 0.0
          %693 = vmatpush.xpose.msra.mxu0 0.0
          %694 = vmatpush.xpose.msra.mxu0 0.0
          %695 = vmatpush.xpose.msra.mxu0 0.0
          %696 = vmatpush.xpose.msra.mxu0 0.0
          %697 = vmatpush.xpose.msra.mxu0 0.0
          %698 = vmatpush.xpose.msra.mxu0 0.0
          %699 = vmatpush.xpose.msra.mxu0 0.0
          %700 = vmatpush.xpose.msra.mxu0 0.0
          %701 = vmatpush.xpose.msra.mxu0 0.0
          %702 = vmatpush.xpose.msra.mxu0 0.0
          %703 = vmatpush.xpose.msra.mxu0 0.0
          %704 = vmatpush.xpose.msra.mxu0 0.0
          %705 = vmatpush.xpose.msra.mxu0 0.0
          %706 = vmatpush.xpose.msra.mxu0 %v689
          %707 = vmatmul.f32.gmra.mxu0 %v687
          %v708 = vpop.f32.mrf.mxu0
          %v709 = vadd.f32 0.0, %v708
          %710 = vdwg.mxu0
          %v711 = vadd.f32 %v709, %v511
          %v712 = vsel %vm567, %v711, %v709
          %v713 = vsel %vm537, %v712, -inf
          %714 = vmax.xlane.f32.xlu0 %v713
          %v715 = vpop.xlane.xlu0 %714
          %v716 = vmax.f32 %v525, %v715
          %v717 = vsub.f32 %v525, %v716
          %v718 = vmul.f32 %v717, 1.442695
          %v719 = vpow.pop %v718
          %v720 = vsub.f32 %v712, %v716
          %v721 = vmul.f32 %v720, 1.442695
          %v722 = vpow.pop %v721
          %v723 = vmul.f32 %v719, %v526
          %v724 = vsel %vm537, %v722, 0.0
          %725 = vadd.xlane.f32.xlu0 %v724
          %v726 = vpop.xlane.xlu0 %725
          %v727 = vadd.f32 %v723, %v726
          %v728 = vmul.f32 %v719, %v527
          %729 = vrot.lane.b32.xlu0 %v535, 112
          %v730 = vpop.permute.xlu0 %729
          %v733 = vsel %vm537, %v722, 0
          %735 = vmatpush.msra.mxu0 0.0
          %736 = vmatpush.msra.mxu0 0.0
          %737 = vmatpush.msra.mxu0 0.0
          %738 = vmatpush.msra.mxu0 0.0
          %739 = vmatpush.msra.mxu0 0.0
          %740 = vmatpush.msra.mxu0 0.0
          %741 = vmatpush.msra.mxu0 0.0
          %742 = vmatpush.msra.mxu0 0.0
          %743 = vmatpush.msra.mxu0 0.0
          %744 = vmatpush.msra.mxu0 0.0
          %745 = vmatpush.msra.mxu0 0.0
          %746 = vmatpush.msra.mxu0 0.0
          %747 = vmatpush.msra.mxu0 0.0
          %748 = vmatpush.msra.mxu0 0.0
          %749 = vmatpush.msra.mxu0 0.0
          %750 = vmatpush.msra.mxu0 %v730
          %751 = vmatmul.f32.gmra.mxu0 %v733
          %v752 = vpop.f32.mrf.mxu0
          %v753 = vadd.f32 0.0, %v752
          %754 = vdwg.mxu0
          %v755 = vadd.f32 %v728, %v753
          %756 = vrot.lane.b32.xlu0 %v505, 104
          %v757 = vpop.permute.xlu0 %756
          %758 = vrot.lane.b32.xlu0 %v533, 104
          %v759 = vpop.permute.xlu0 %758
          %v760 = vsel %vm537, %v757, 0
          %v762 = vsel %vm537, %v759, 0
          %764 = vmatpush.xpose.msra.mxu0 0.0
          %765 = vmatpush.xpose.msra.mxu0 0.0
          %766 = vmatpush.xpose.msra.mxu0 0.0
          %767 = vmatpush.xpose.msra.mxu0 0.0
          %768 = vmatpush.xpose.msra.mxu0 0.0
          %769 = vmatpush.xpose.msra.mxu0 0.0
          %770 = vmatpush.xpose.msra.mxu0 0.0
          %771 = vmatpush.xpose.msra.mxu0 0.0
          %772 = vmatpush.xpose.msra.mxu0 0.0
          %773 = vmatpush.xpose.msra.mxu0 0.0
          %774 = vmatpush.xpose.msra.mxu0 0.0
          %775 = vmatpush.xpose.msra.mxu0 0.0
          %776 = vmatpush.xpose.msra.mxu0 0.0
          %777 = vmatpush.xpose.msra.mxu0 0.0
          %778 = vmatpush.xpose.msra.mxu0 0.0
          %779 = vmatpush.xpose.msra.mxu0 %v762
          %780 = vmatmul.f32.gmra.mxu0 %v760
          %v781 = vpop.f32.mrf.mxu0
          %v782 = vadd.f32 0.0, %v781
          %783 = vdwg.mxu0
          %v784 = vadd.f32 %v782, %v511
          %v785 = vsel %vm567, %v784, %v782
          %v786 = vsel %vm537, %v785, -inf
          %787 = vmax.xlane.f32.xlu0 %v786
          %v788 = vpop.xlane.xlu0 %787
          %v789 = vmax.f32 %v528, %v788
          %v790 = vsub.f32 %v528, %v789
          %v791 = vmul.f32 %v790, 1.442695
          %v792 = vpow.pop %v791
          %v793 = vsub.f32 %v785, %v789
          %v794 = vmul.f32 %v793, 1.442695
          %v795 = vpow.pop %v794
          %v796 = vmul.f32 %v792, %v529
          %v797 = vsel %vm537, %v795, 0.0
          %798 = vadd.xlane.f32.xlu0 %v797
          %v799 = vpop.xlane.xlu0 %798
          %v800 = vadd.f32 %v796, %v799
          %v801 = vmul.f32 %v792, %v530
          %802 = vrot.lane.b32.xlu0 %v535, 104
          %v803 = vpop.permute.xlu0 %802
          %v806 = vsel %vm537, %v795, 0
          %808 = vmatpush.msra.mxu0 0.0
          %809 = vmatpush.msra.mxu0 0.0
          %810 = vmatpush.msra.mxu0 0.0
          %811 = vmatpush.msra.mxu0 0.0
          %812 = vmatpush.msra.mxu0 0.0
          %813 = vmatpush.msra.mxu0 0.0
          %814 = vmatpush.msra.mxu0 0.0
          %815 = vmatpush.msra.mxu0 0.0
          %816 = vmatpush.msra.mxu0 0.0
          %817 = vmatpush.msra.mxu0 0.0
          %818 = vmatpush.msra.mxu0 0.0
          %819 = vmatpush.msra.mxu0 0.0
          %820 = vmatpush.msra.mxu0 0.0
          %821 = vmatpush.msra.mxu0 0.0
          %822 = vmatpush.msra.mxu0 0.0
          %823 = vmatpush.msra.mxu0 %v803
          %824 = vmatmul.f32.gmra.mxu0 %v806
          %v825 = vpop.f32.mrf.mxu0
          %v826 = vadd.f32 0.0, %v825
          %827 = vdwg.mxu0
          %v828 = vadd.f32 %v801, %v826
        $region81: #{tpu_custom_call.1} parent=51 // loop_footer
          %s516 = sadd.s32 %s514, 1
        $region82: #{tpu_custom_call.1} parent=51 // loop_footer_branch
          %513 = sbr.rel target = $region78
        $region83: #{tpu_custom_call.1} parent=51 // loop_exit
          _
        %v829 = vrcp.pop %v520
        %v830 = vmul.f32 %v521, %v829
        %vm831 = vcmask 64512
        %832 = vst.msk [vmem:[#allocation4] sm:$0xff] %vm831, %v830
        %v833 = vrcp.pop %v523
        %v834 = vmul.f32 %v524, %v833
        %836 = vrot.lane.b32.xlu0 %v834, 8
        %v837 = vpop.permute.xlu0 %836
        %vm839 = vcmask 130112
        %840 = vst.msk [vmem:[#allocation4] sm:$0xff] %vm839, %v837
        %v841 = vrcp.pop %v526
        %v842 = vmul.f32 %v527, %v841
        %844 = vrot.lane.b32.xlu0 %v842, 16
        %v845 = vpop.permute.xlu0 %844
        %vm847 = vcmask 195712
        %848 = vst.msk [vmem:[#allocation4] sm:$0xff] %vm847, %v845
        %v849 = vrcp.pop %v529
        %v850 = vmul.f32 %v530, %v849
        %852 = vrot.lane.b32.xlu0 %v850, 24
        %v853 = vpop.permute.xlu0 %852
        %vm855 = vcmask 261312
        %856 = vst.msk [vmem:[#allocation4] sm:$0xff] %vm855, %v853
        %v857 = vld [vmem:[#allocation4] sm:$0xff]
        %v858 = vld [vmem:[#allocation13] sm:$0xff]
        %v859 = vld [vmem:[#allocation13 + $0x8] sm:$0xff]
        %v860 = vld [vmem:[#allocation13 + $0x10] sm:$0xff]
        %v861 = vld [vmem:[#allocation13 + $0x18] sm:$0xff]
        %v863 = vsel %vm481, %v857, 0
        %865 = vmatpush.msra.mxu0 0.0
        %866 = vmatpush.msra.mxu0 0.0
        %867 = vmatpush.msra.mxu0 0.0
        %868 = vmatpush.msra.mxu0 0.0
        %869 = vmatpush.msra.mxu0 0.0
        %870 = vmatpush.msra.mxu0 0.0
        %871 = vmatpush.msra.mxu0 0.0
        %872 = vmatpush.msra.mxu0 0.0
        %873 = vmatpush.msra.mxu0 0.0
        %874 = vmatpush.msra.mxu0 0.0
        %875 = vmatpush.msra.mxu0 0.0
        %876 = vmatpush.msra.mxu0 0.0
        %877 = vmatpush.msra.mxu0 %v861
        %878 = vmatpush.msra.mxu0 %v860
        %879 = vmatpush.msra.mxu0 %v859
        %880 = vmatpush.msra.mxu0 %v858
        %881 = vmatmul.f32.gmra.mxu0 %v863
        %v882 = vpop.f32.mrf.mxu0
        %v883 = vadd.f32 0.0, %v882
        %884 = vdwg.mxu0
        %885 = vst.msk [vmem:[%s402] sm:$0xff] %vm481, %v883
        %s886 = sand.u32 %s222, 1
        %s887 = scalar_lea.sflag [#allocation7], %s886
        %s888 = sand.u32 %s222, 1
        %s889 = smul.addr %s888, 8
        %s890 = scalar_lea.vmem [#allocation14], %s889
        // Predicated region
        $region84: #{tpu_custom_call.1} parent=51 // pred_check
          %p891 = pneg %p232
        $region85: #{tpu_custom_call.1} parent=51 // pred_check_branch
          %893 = sbr.rel (%p891) target = $region87
        $region86: #{tpu_custom_call.1} parent=51 // pred_region
          %895 = vsyncadd %s887, 0
          %s896 = sadd.s32 %s32, %s31
          %s897 = smul.addr %s896, 8
          %s898 = scalar_lea.hbm %s8, %s897
          %s900 = sshll.u32 %s890, 4
          %s901 = int_to_ptr.vmem [resolvable:$true] %s900
          %s902 = sshll.u32 %s898, 4
          %s903 = int_to_ptr.hbm [resolvable:$true] %s902
          %905 = dma.vmem_to_hbm [thread:$0]  %s901, 128, %s903, %s887
        $region87: #{tpu_custom_call.1} parent=51 // pred_fallthru
          _
      $region52: #{tpu_custom_call.1} parent=5 // pred_fallthru
        _
      %p906 = scmp.le.s32.totalorder 2, %s22
      // Predicated region
      $region88: #{tpu_custom_call.1} parent=5 // pred_check
        %p907 = pneg %p906
      $region89: #{tpu_custom_call.1} parent=5 // pred_check_branch
        %909 = sbr.rel (%p907) target = $region91
      $region90: #{tpu_custom_call.1} parent=5 // pred_region
        %s910 = ssub.s32 %s22, 2
        // Predicated region
        $region92: #{tpu_custom_call.1} parent=90 // pred_check
          %p911 = pneg %p238
        $region93: #{tpu_custom_call.1} parent=90 // pred_check_branch
          %913 = sbr.rel (%p911) target = $region95
        $region94: #{tpu_custom_call.1} parent=90 // pred_region
          %s914 = sand.u32 %s223, 1
          %s915 = scalar_lea.sflag [#allocation7], %s914
          %s916 = sand.u32 %s223, 1
          %s917 = smul.addr %s916, 8
          %s918 = scalar_lea.vmem [#allocation14], %s917
          %920 = dma.done %s915, 128
        $region95: #{tpu_custom_call.1} parent=90 // pred_fallthru
          _
      $region91: #{tpu_custom_call.1} parent=5 // pred_fallthru
        _
    $region6: #{tpu_custom_call.1} parent=1 // loop_footer
      %s26 = sadd.s32 1, %s22
    $region7: #{tpu_custom_call.1} parent=1 // loop_footer_branch
      %21 = sbr.rel target = $region3
    $region8: #{tpu_custom_call.1} parent=1 // loop_exit
      _
    %921 = vsyncpa [#allocation6], 1
    %s922 = scalar_lea.sflag [#allocation6], 1
    %923 = vsyncpa %s922, 1
    %924 = vsyncpa [#allocation9], 1
    %925 = vsyncpa [#allocation12], 1
    %926 = vsyncpa [#allocation7], 1
    %s927 = scalar_lea.sflag [#allocation7], 1
    %928 = vsyncpa %s927, 1

</llo_original>
